<compile_context>
chip_gen: v5e
topology: v5e:2x2
jax: 0.10.0
libtpu: 0.0.40
codegen_flags: <defaults>
</compile_context>

<pallas_src>
import math

import jax
import jax.numpy as jnp
from jax.experimental import pallas as pl
from jax.experimental.pallas import tpu as pltpu

# ------------------- config: scaled-down "bert-base-cased" ---------------------
VOCAB = 100
HIDDEN = 32
N_HEADS = 4
HEAD_DIM = HIDDEN // N_HEADS
INTERMEDIATE = 64
N_LAYERS = 2
MAX_POS = 16
N_CLASSES = 3
LN_EPS = 1e-12


# ------------------------------ fused Pallas kernel ------------------------------
def _fused_kernel(
    emb_ref,      # (1, S, H)   embeddings for this batch element
    bias_ref,     # (1, 1, S)   additive attention-mask bias
    emb_g_ref, emb_b_ref,                 # (1, H)
    w_qkv_ref, b_qkv_ref,                 # (L, H, 3H), (L, 1, 3H)
    w_o_ref, b_o_ref,                     # (L, H, H), (L, 1, H)
    ln1_g_ref, ln1_b_ref,                 # (L, 1, H)
    w_fc1_ref, b_fc1_ref,                 # (L, H, I), (L, 1, I)
    w_fc2_ref, b_fc2_ref,                 # (L, I, H), (L, 1, H)
    ln2_g_ref, ln2_b_ref,                 # (L, 1, H)
    w_pool_ref, b_pool_ref,               # (H, H), (1, H)
    w_out_ref, b_out_ref,                 # (H, C), (1, C)
    probs_ref,                            # (1, 1, C)
):
    def layer_norm(x, g, b):
        mu = jnp.mean(x, axis=-1, keepdims=True)
        var = jnp.mean(jnp.square(x - mu), axis=-1, keepdims=True)
        return (x - mu) * jax.lax.rsqrt(var + LN_EPS) * g + b

    x = emb_ref[0].astype(jnp.float32)       # (S, H)
    bias = bias_ref[0]                       # (1, S) additive mask bias
    h = layer_norm(x, emb_g_ref[...], emb_b_ref[...])

    # Unrolled loop over encoder layers; all weights already VMEM-resident.
    for l in range(N_LAYERS):
        # Fused QKV projection: one (S,H) @ (H,3H) MXU pass (scale already folded in W_q).
        qkv = jnp.dot(h, w_qkv_ref[l], preferred_element_type=jnp.float32) + b_qkv_ref[l]

        # Per-head attention with static lane slices; head-merge fused into the output
        # projection (ctx @ W_o == sum_h ctx_h @ W_o[h*Dh:(h+1)*Dh, :]).
        head_outs = []
        w_o_l = w_o_ref[l]                                   # (H, H)
        for hd in range(N_HEADS):
            q_lo = hd * HEAD_DIM
            k_lo = HIDDEN + hd * HEAD_DIM
            v_lo = 2 * HIDDEN + hd * HEAD_DIM
            qh = qkv[:, q_lo:q_lo + HEAD_DIM]                # (S, Dh)
            kh = qkv[:, k_lo:k_lo + HEAD_DIM]                # (S, Dh)
            vh = qkv[:, v_lo:v_lo + HEAD_DIM]                # (S, Dh)
            s = jax.lax.dot_general(                         # (S, S) = q . k^T
                qh, kh, (((1,), (1,)), ((), ())),
                preferred_element_type=jnp.float32)
            s = s + bias                                     # broadcast over query rows
            m = jnp.max(s, axis=-1, keepdims=True)
            p = jnp.exp(s - m)
            p = p * pl.reciprocal(jnp.sum(p, axis=-1, keepdims=True), approx=True)
            ctx_h = jnp.dot(p, vh, preferred_element_type=jnp.float32)     # (S, Dh)
            wo_h = w_o_l[hd * HEAD_DIM:(hd + 1) * HEAD_DIM, :]             # (Dh, H)
            head_outs.append(jnp.dot(ctx_h, wo_h, preferred_element_type=jnp.float32))
        attn_out = sum(head_outs) + b_o_ref[l]               # (S, H)

        # Residual + LayerNorm fused as an epilogue (never leaves VMEM).
        h1 = layer_norm(attn_out + h, ln1_g_ref[l], ln1_b_ref[l])

        # FFN with GELU, then residual + LayerNorm.
        ffn = jnp.dot(h1, w_fc1_ref[l], preferred_element_type=jnp.float32) + b_fc1_ref[l]
        # TODO(synk): HF BERT uses exact (erf) GELU; tanh approximation used here.
        ffn = jax.nn.gelu(ffn, approximate=True)
        ffn = jnp.dot(ffn, w_fc2_ref[l], preferred_element_type=jnp.float32) + b_fc2_ref[l]
        h = layer_norm(ffn + h1, ln2_g_ref[l], ln2_b_ref[l])

    # BERT pooler on the [CLS] (first) token: dense + tanh.
    cls = h[0:1, :]                                          # (1, H)
    pooled = jnp.tanh(
        jnp.dot(cls, w_pool_ref[...], preferred_element_type=jnp.float32) + b_pool_ref[...])

    # nn.Dropout(p=0.3): identity at inference time.
    # TODO(synk): training-mode dropout (Bernoulli mask, scale 1/(1-p)) not implemented.

    # Classifier + nn.Softmax(dim=1) (exact division so probabilities sum to 1).
    logits = jnp.dot(pooled, w_out_ref[...], preferred_element_type=jnp.float32) + b_out_ref[...]
    m = jnp.max(logits, axis=-1, keepdims=True)
    e = jnp.exp(logits - m)
    probs = e / jnp.sum(e, axis=-1, keepdims=True)           # (1, C)
    probs_ref[0] = probs.astype(probs_ref.dtype)


# ------------------------------ parameters --------------------------------------
def init_params(key):
    keys = iter(jax.random.split(key, 64))

    def w(shape):
        return jax.random.normal(next(keys), shape, jnp.float32) * 0.02

    scale = 1.0 / math.sqrt(HEAD_DIM)
    ones_h = jnp.ones((1, HIDDEN), jnp.float32)
    zeros_h = jnp.zeros((1, HIDDEN), jnp.float32)

    w_qkv, b_qkv, w_o, b_o = [], [], [], []
    ln1_g, ln1_b, ln2_g, ln2_b = [], [], [], []
    w_fc1, b_fc1, w_fc2, b_fc2 = [], [], [], []
    for _ in range(N_LAYERS):
        wq, wk, wv = w((HIDDEN, HIDDEN)), w((HIDDEN, HIDDEN)), w((HIDDEN, HIDDEN))
        bq = jnp.zeros((HIDDEN,), jnp.float32)
        bk = jnp.zeros((HIDDEN,), jnp.float32)
        bv = jnp.zeros((HIDDEN,), jnp.float32)
        # Fold the 1/sqrt(Dh) attention scale into the query projection at parameter time.
        w_qkv.append(jnp.concatenate([wq * scale, wk, wv], axis=1))
        b_qkv.append(jnp.concatenate([bq * scale, bk, bv], axis=0).reshape(1, 3 * HIDDEN))
        w_o.append(w((HIDDEN, HIDDEN)))
        b_o.append(jnp.zeros((1, HIDDEN), jnp.float32))
        ln1_g.append(ones_h)
        ln1_b.append(zeros_h)
        w_fc1.append(w((HIDDEN, INTERMEDIATE)))
        b_fc1.append(jnp.zeros((1, INTERMEDIATE), jnp.float32))
        w_fc2.append(w((INTERMEDIATE, HIDDEN)))
        b_fc2.append(jnp.zeros((1, HIDDEN), jnp.float32))
        ln2_g.append(ones_h)
        ln2_b.append(zeros_h)

    return {
        "word_emb": w((VOCAB, HIDDEN)),
        "pos_emb": w((MAX_POS, HIDDEN)),
        "type_emb": w((2, HIDDEN)),
        "emb_ln_g": ones_h, "emb_ln_b": zeros_h,
        "w_qkv": jnp.stack(w_qkv), "b_qkv": jnp.stack(b_qkv),
        "w_o": jnp.stack(w_o), "b_o": jnp.stack(b_o),
        "ln1_g": jnp.stack(ln1_g), "ln1_b": jnp.stack(ln1_b),
        "w_fc1": jnp.stack(w_fc1), "b_fc1": jnp.stack(b_fc1),
        "w_fc2": jnp.stack(w_fc2), "b_fc2": jnp.stack(b_fc2),
        "ln2_g": jnp.stack(ln2_g), "ln2_b": jnp.stack(ln2_b),
        "w_pool": w((HIDDEN, HIDDEN)),
        "b_pool": jnp.zeros((1, HIDDEN), jnp.float32),
        "w_out": w((HIDDEN, N_CLASSES)),
        "b_out": jnp.zeros((1, N_CLASSES), jnp.float32),
    }


# ------------------------------ forward pass -------------------------------------
_WEIGHT_KEYS = (
    "emb_ln_g", "emb_ln_b",
    "w_qkv", "b_qkv", "w_o", "b_o", "ln1_g", "ln1_b",
    "w_fc1", "b_fc1", "w_fc2", "b_fc2", "ln2_g", "ln2_b",
    "w_pool", "b_pool", "w_out", "b_out",
)


def _replicated_spec(shape):
    # Full-array block, same block for every grid step (weights stay resident in VMEM).
    zeros = (0,) * len(shape)
    return pl.BlockSpec(shape, lambda b, _z=zeros: _z)


def sentiment_classifier_forward(params, input_ids, attention_mask):
    B, S = input_ids.shape

    # Embedding lookups are glue JAX (gather); everything downstream runs in one kernel.
    emb = (
        params["word_emb"][input_ids]
        + params["pos_emb"][jnp.arange(S)][None, :, :]
        + params["type_emb"][0][None, None, :]
    )                                                           # (B, S, H)
    bias = ((1.0 - attention_mask.astype(jnp.float32)) * -1e9).reshape(B, 1, S)

    weights = [params[k] for k in _WEIGHT_KEYS]
    in_specs = [
        pl.BlockSpec((1, S, HIDDEN), lambda b: (b, 0, 0)),      # emb, per-batch block
        pl.BlockSpec((1, 1, S), lambda b: (b, 0, 0)),           # mask bias, per-batch block
    ] + [_replicated_spec(wt.shape) for wt in weights]

    probs = pl.pallas_call(
        _fused_kernel,
        out_shape=jax.ShapeDtypeStruct((B, 1, N_CLASSES), jnp.float32),
        grid=(B,),
        in_specs=in_specs,
        out_specs=pl.BlockSpec((1, 1, N_CLASSES), lambda b: (b, 0, 0)),
        compiler_params=pltpu.CompilerParams(
            dimension_semantics=("parallel",),                  # v7x: shard batch over 2 TCs
        ),
    )(emb, bias, *weights)
    return probs.reshape(B, N_CLASSES)


# ------------------------------------ main ---------------------------------------
if __name__ == "__main__":
    B, S = 2, 8
    key = jax.random.PRNGKey(0)
    k_param, k_ids = jax.random.split(key)

    params = init_params(k_param)
    input_ids = jax.random.randint(k_ids, (B, S), 0, VOCAB, dtype=jnp.int32)
    attention_mask = jnp.array(
        [[1, 1, 1, 1, 1, 1, 1, 1],
         [1, 1, 1, 1, 1, 1, 0, 0]], dtype=jnp.int32
    )

    probs = sentiment_classifier_forward(params, input_ids, attention_mask)
    probs = jax.block_until_ready(probs)

    assert probs.shape == (B, N_CLASSES)
    assert bool(jnp.all(jnp.isfinite(probs)))
    assert bool(jnp.allclose(jnp.sum(probs, axis=1), 1.0, atol=1e-5))
    print("KERNEL_OK")
</pallas_src>

<mosaic_0001>
module attributes {stable_mosaic.version = 11 : i64} {
  func.func @_fused_kernel(%arg0: i32, %arg1: memref<1x8x32xf32, #tpu.memory_space<vmem>>, %arg2: memref<1x1x8xf32, #tpu.memory_space<vmem>>, %arg3: memref<1x32xf32, #tpu.memory_space<vmem>>, %arg4: memref<1x32xf32, #tpu.memory_space<vmem>>, %arg5: memref<2x32x96xf32, #tpu.memory_space<vmem>>, %arg6: memref<2x1x96xf32, #tpu.memory_space<vmem>>, %arg7: memref<2x32x32xf32, #tpu.memory_space<vmem>>, %arg8: memref<2x1x32xf32, #tpu.memory_space<vmem>>, %arg9: memref<2x1x32xf32, #tpu.memory_space<vmem>>, %arg10: memref<2x1x32xf32, #tpu.memory_space<vmem>>, %arg11: memref<2x32x64xf32, #tpu.memory_space<vmem>>, %arg12: memref<2x1x64xf32, #tpu.memory_space<vmem>>, %arg13: memref<2x64x32xf32, #tpu.memory_space<vmem>>, %arg14: memref<2x1x32xf32, #tpu.memory_space<vmem>>, %arg15: memref<2x1x32xf32, #tpu.memory_space<vmem>>, %arg16: memref<2x1x32xf32, #tpu.memory_space<vmem>>, %arg17: memref<32x32xf32, #tpu.memory_space<vmem>>, %arg18: memref<1x32xf32, #tpu.memory_space<vmem>>, %arg19: memref<32x3xf32, #tpu.memory_space<vmem>>, %arg20: memref<1x3xf32, #tpu.memory_space<vmem>>, %arg21: memref<1x1x3xf32, #tpu.memory_space<vmem>>) attributes {dimension_semantics = [#tpu.dimension_semantics<parallel>], iteration_bounds = array<i64: 2>, scalar_prefetch = 0 : i64, scratch_operands = 0 : i64, tpu.core_type = #tpu.core_type<tc>, window_params = [{transform_indices = @transform_0, window_bounds = array<i64: 1, 8, 32>}, {transform_indices = @transform_1, window_bounds = array<i64: 1, 1, 8>}, {pipeline_mode = #tpu.pipeline_mode<synchronous>, transform_indices = @transform_2, window_bounds = array<i64: 1, 32>}, {pipeline_mode = #tpu.pipeline_mode<synchronous>, transform_indices = @transform_3, window_bounds = array<i64: 1, 32>}, {pipeline_mode = #tpu.pipeline_mode<synchronous>, transform_indices = @transform_4, window_bounds = array<i64: 2, 32, 96>}, {pipeline_mode = #tpu.pipeline_mode<synchronous>, transform_indices = @transform_5, window_bounds = array<i64: 2, 1, 96>}, {pipeline_mode = #tpu.pipeline_mode<synchronous>, transform_indices = @transform_6, window_bounds = array<i64: 2, 32, 32>}, {pipeline_mode = #tpu.pipeline_mode<synchronous>, transform_indices = @transform_7, window_bounds = array<i64: 2, 1, 32>}, {pipeline_mode = #tpu.pipeline_mode<synchronous>, transform_indices = @transform_8, window_bounds = array<i64: 2, 1, 32>}, {pipeline_mode = #tpu.pipeline_mode<synchronous>, transform_indices = @transform_9, window_bounds = array<i64: 2, 1, 32>}, {pipeline_mode = #tpu.pipeline_mode<synchronous>, transform_indices = @transform_10, window_bounds = array<i64: 2, 32, 64>}, {pipeline_mode = #tpu.pipeline_mode<synchronous>, transform_indices = @transform_11, window_bounds = array<i64: 2, 1, 64>}, {pipeline_mode = #tpu.pipeline_mode<synchronous>, transform_indices = @transform_12, window_bounds = array<i64: 2, 64, 32>}, {pipeline_mode = #tpu.pipeline_mode<synchronous>, transform_indices = @transform_13, window_bounds = array<i64: 2, 1, 32>}, {pipeline_mode = #tpu.pipeline_mode<synchronous>, transform_indices = @transform_14, window_bounds = array<i64: 2, 1, 32>}, {pipeline_mode = #tpu.pipeline_mode<synchronous>, transform_indices = @transform_15, window_bounds = array<i64: 2, 1, 32>}, {pipeline_mode = #tpu.pipeline_mode<synchronous>, transform_indices = @transform_16, window_bounds = array<i64: 32, 32>}, {pipeline_mode = #tpu.pipeline_mode<synchronous>, transform_indices = @transform_17, window_bounds = array<i64: 1, 32>}, {pipeline_mode = #tpu.pipeline_mode<synchronous>, transform_indices = @transform_18, window_bounds = array<i64: 32, 3>}, {pipeline_mode = #tpu.pipeline_mode<synchronous>, transform_indices = @transform_19, window_bounds = array<i64: 1, 3>}, {transform_indices = @transform_20, window_bounds = array<i64: 1, 1, 3>}]} {
    %c0 = arith.constant 0 : index
    %c0_0 = arith.constant 0 : index
    %c0_1 = arith.constant 0 : index
    %0 = vector.load %arg1[%c0, %c0_0, %c0_1] : memref<1x8x32xf32, #tpu.memory_space<vmem>>, vector<1x8x32xf32>
    %1 = vector.shape_cast %0 : vector<1x8x32xf32> to vector<8x32xf32>
    %c0_2 = arith.constant 0 : index
    %c0_3 = arith.constant 0 : index
    %c0_4 = arith.constant 0 : index
    %2 = vector.load %arg2[%c0_2, %c0_3, %c0_4] : memref<1x1x8xf32, #tpu.memory_space<vmem>>, vector<1x1x8xf32>
    %3 = vector.shape_cast %2 : vector<1x1x8xf32> to vector<1x8xf32>
    %c0_5 = arith.constant 0 : index
    %c0_6 = arith.constant 0 : index
    %4 = vector.load %arg3[%c0_5, %c0_6] : memref<1x32xf32, #tpu.memory_space<vmem>>, vector<1x32xf32>
    %c0_7 = arith.constant 0 : index
    %c0_8 = arith.constant 0 : index
    %5 = vector.load %arg4[%c0_7, %c0_8] : memref<1x32xf32, #tpu.memory_space<vmem>>, vector<1x32xf32>
    %cst = arith.constant dense<0.000000e+00> : vector<8xf32>
    %6 = vector.multi_reduction <add>, %1, %cst [1] : vector<8x32xf32> to vector<8xf32>
    %7 = vector.shape_cast %6 : vector<8xf32> to vector<8x1xf32>
    %cst_9 = arith.constant 3.200000e+01 : f32
    %8 = vector.broadcast %cst_9 : f32 to vector<8x1xf32>
    %9 = arith.divf %7, %8 : vector<8x1xf32>
    %10 = vector.broadcast %9 : vector<8x1xf32> to vector<8x32xf32>
    %11 = arith.subf %1, %10 : vector<8x32xf32>
    %12 = arith.mulf %11, %11 : vector<8x32xf32>
    %cst_10 = arith.constant dense<0.000000e+00> : vector<8xf32>
    %13 = vector.multi_reduction <add>, %12, %cst_10 [1] : vector<8x32xf32> to vector<8xf32>
    %14 = vector.shape_cast %13 : vector<8xf32> to vector<8x1xf32>
    %cst_11 = arith.constant 3.200000e+01 : f32
    %15 = vector.broadcast %cst_11 : f32 to vector<8x1xf32>
    %16 = arith.divf %14, %15 : vector<8x1xf32>
    %17 = vector.broadcast %9 : vector<8x1xf32> to vector<8x32xf32>
    %18 = arith.subf %1, %17 : vector<8x32xf32>
    %cst_12 = arith.constant 9.99999996E-13 : f32
    %19 = vector.broadcast %cst_12 : f32 to vector<8x1xf32>
    %20 = arith.addf %16, %19 : vector<8x1xf32>
    %21 = math.rsqrt %20 : vector<8x1xf32>
    %22 = vector.broadcast %21 : vector<8x1xf32> to vector<8x32xf32>
    %23 = arith.mulf %18, %22 : vector<8x32xf32>
    %24 = vector.broadcast %4 : vector<1x32xf32> to vector<8x32xf32>
    %25 = arith.mulf %23, %24 : vector<8x32xf32>
    %26 = vector.broadcast %5 : vector<1x32xf32> to vector<8x32xf32>
    %27 = arith.addf %25, %26 : vector<8x32xf32>
    %c0_13 = arith.constant 0 : index
    %c0_14 = arith.constant 0 : index
    %c0_15 = arith.constant 0 : index
    %28 = vector.load %arg5[%c0_13, %c0_14, %c0_15] : memref<2x32x96xf32, #tpu.memory_space<vmem>>, vector<1x32x96xf32>
    %29 = vector.shape_cast %28 : vector<1x32x96xf32> to vector<32x96xf32>
    %cst_16 = arith.constant dense<0.000000e+00> : vector<8x96xf32>
    %30 = tpu.matmul %27, %29, %cst_16 {dimension_numbers = #tpu.dot_dimension_numbers<[1], [0], [0], [1], [0, 0, 1, 1], [], []>} : vector<8x32xf32>, vector<32x96xf32>, vector<8x96xf32> -> vector<8x96xf32>
    %c0_17 = arith.constant 0 : index
    %c0_18 = arith.constant 0 : index
    %c0_19 = arith.constant 0 : index
    %31 = vector.load %arg6[%c0_17, %c0_18, %c0_19] : memref<2x1x96xf32, #tpu.memory_space<vmem>>, vector<1x1x96xf32>
    %32 = vector.shape_cast %31 : vector<1x1x96xf32> to vector<1x96xf32>
    %33 = vector.broadcast %32 : vector<1x96xf32> to vector<8x96xf32>
    %34 = arith.addf %30, %33 : vector<8x96xf32>
    %c0_20 = arith.constant 0 : index
    %c0_21 = arith.constant 0 : index
    %c0_22 = arith.constant 0 : index
    %35 = vector.load %arg7[%c0_20, %c0_21, %c0_22] : memref<2x32x32xf32, #tpu.memory_space<vmem>>, vector<1x32x32xf32>
    %36 = vector.shape_cast %35 : vector<1x32x32xf32> to vector<32x32xf32>
    %37 = vector.extract_strided_slice %34 {offsets = [0, 0], sizes = [8, 8], strides = [1, 1]} : vector<8x96xf32> to vector<8x8xf32>
    %38 = vector.extract_strided_slice %34 {offsets = [0, 32], sizes = [8, 8], strides = [1, 1]} : vector<8x96xf32> to vector<8x8xf32>
    %39 = vector.extract_strided_slice %34 {offsets = [0, 64], sizes = [8, 8], strides = [1, 1]} : vector<8x96xf32> to vector<8x8xf32>
    %cst_23 = arith.constant dense<0.000000e+00> : vector<8x8xf32>
    %40 = tpu.matmul %37, %38, %cst_23 {dimension_numbers = #tpu.dot_dimension_numbers<[1], [1], [0], [0], [0, 0, 1, 0], [], []>} : vector<8x8xf32>, vector<8x8xf32>, vector<8x8xf32> -> vector<8x8xf32>
    %41 = vector.broadcast %3 : vector<1x8xf32> to vector<8x8xf32>
    %42 = arith.addf %40, %41 : vector<8x8xf32>
    %cst_24 = arith.constant dense<0xFF800000> : vector<8xf32>
    %43 = vector.multi_reduction <maximumf>, %42, %cst_24 [1] : vector<8x8xf32> to vector<8xf32>
    %44 = vector.shape_cast %43 : vector<8xf32> to vector<8x1xf32>
    %45 = vector.broadcast %44 : vector<8x1xf32> to vector<8x8xf32>
    %46 = arith.subf %42, %45 : vector<8x8xf32>
    %47 = math.exp %46 : vector<8x8xf32>
    %cst_25 = arith.constant dense<0.000000e+00> : vector<8xf32>
    %48 = vector.multi_reduction <add>, %47, %cst_25 [1] : vector<8x8xf32> to vector<8xf32>
    %49 = vector.shape_cast %48 : vector<8xf32> to vector<8x1xf32>
    %50 = tpu.reciprocal %49 {approx = true} : vector<8x1xf32> -> vector<8x1xf32>
    %51 = vector.broadcast %50 : vector<8x1xf32> to vector<8x8xf32>
    %52 = arith.mulf %47, %51 : vector<8x8xf32>
    %cst_26 = arith.constant dense<0.000000e+00> : vector<8x8xf32>
    %53 = tpu.matmul %52, %39, %cst_26 {dimension_numbers = #tpu.dot_dimension_numbers<[1], [0], [0], [1], [0, 0, 1, 1], [], []>} : vector<8x8xf32>, vector<8x8xf32>, vector<8x8xf32> -> vector<8x8xf32>
    %54 = vector.extract_strided_slice %36 {offsets = [0, 0], sizes = [8, 32], strides = [1, 1]} : vector<32x32xf32> to vector<8x32xf32>
    %cst_27 = arith.constant dense<0.000000e+00> : vector<8x32xf32>
    %55 = tpu.matmul %53, %54, %cst_27 {dimension_numbers = #tpu.dot_dimension_numbers<[1], [0], [0], [1], [0, 0, 1, 1], [], []>} : vector<8x8xf32>, vector<8x32xf32>, vector<8x32xf32> -> vector<8x32xf32>
    %56 = vector.extract_strided_slice %34 {offsets = [0, 8], sizes = [8, 8], strides = [1, 1]} : vector<8x96xf32> to vector<8x8xf32>
    %57 = vector.extract_strided_slice %34 {offsets = [0, 40], sizes = [8, 8], strides = [1, 1]} : vector<8x96xf32> to vector<8x8xf32>
    %58 = vector.extract_strided_slice %34 {offsets = [0, 72], sizes = [8, 8], strides = [1, 1]} : vector<8x96xf32> to vector<8x8xf32>
    %cst_28 = arith.constant dense<0.000000e+00> : vector<8x8xf32>
    %59 = tpu.matmul %56, %57, %cst_28 {dimension_numbers = #tpu.dot_dimension_numbers<[1], [1], [0], [0], [0, 0, 1, 0], [], []>} : vector<8x8xf32>, vector<8x8xf32>, vector<8x8xf32> -> vector<8x8xf32>
    %60 = vector.broadcast %3 : vector<1x8xf32> to vector<8x8xf32>
    %61 = arith.addf %59, %60 : vector<8x8xf32>
    %cst_29 = arith.constant dense<0xFF800000> : vector<8xf32>
    %62 = vector.multi_reduction <maximumf>, %61, %cst_29 [1] : vector<8x8xf32> to vector<8xf32>
    %63 = vector.shape_cast %62 : vector<8xf32> to vector<8x1xf32>
    %64 = vector.broadcast %63 : vector<8x1xf32> to vector<8x8xf32>
    %65 = arith.subf %61, %64 : vector<8x8xf32>
    %66 = math.exp %65 : vector<8x8xf32>
    %cst_30 = arith.constant dense<0.000000e+00> : vector<8xf32>
    %67 = vector.multi_reduction <add>, %66, %cst_30 [1] : vector<8x8xf32> to vector<8xf32>
    %68 = vector.shape_cast %67 : vector<8xf32> to vector<8x1xf32>
    %69 = tpu.reciprocal %68 {approx = true} : vector<8x1xf32> -> vector<8x1xf32>
    %70 = vector.broadcast %69 : vector<8x1xf32> to vector<8x8xf32>
    %71 = arith.mulf %66, %70 : vector<8x8xf32>
    %cst_31 = arith.constant dense<0.000000e+00> : vector<8x8xf32>
    %72 = tpu.matmul %71, %58, %cst_31 {dimension_numbers = #tpu.dot_dimension_numbers<[1], [0], [0], [1], [0, 0, 1, 1], [], []>} : vector<8x8xf32>, vector<8x8xf32>, vector<8x8xf32> -> vector<8x8xf32>
    %73 = vector.extract_strided_slice %36 {offsets = [8, 0], sizes = [8, 32], strides = [1, 1]} : vector<32x32xf32> to vector<8x32xf32>
    %cst_32 = arith.constant dense<0.000000e+00> : vector<8x32xf32>
    %74 = tpu.matmul %72, %73, %cst_32 {dimension_numbers = #tpu.dot_dimension_numbers<[1], [0], [0], [1], [0, 0, 1, 1], [], []>} : vector<8x8xf32>, vector<8x32xf32>, vector<8x32xf32> -> vector<8x32xf32>
    %75 = vector.extract_strided_slice %34 {offsets = [0, 16], sizes = [8, 8], strides = [1, 1]} : vector<8x96xf32> to vector<8x8xf32>
    %76 = vector.extract_strided_slice %34 {offsets = [0, 48], sizes = [8, 8], strides = [1, 1]} : vector<8x96xf32> to vector<8x8xf32>
    %77 = vector.extract_strided_slice %34 {offsets = [0, 80], sizes = [8, 8], strides = [1, 1]} : vector<8x96xf32> to vector<8x8xf32>
    %cst_33 = arith.constant dense<0.000000e+00> : vector<8x8xf32>
    %78 = tpu.matmul %75, %76, %cst_33 {dimension_numbers = #tpu.dot_dimension_numbers<[1], [1], [0], [0], [0, 0, 1, 0], [], []>} : vector<8x8xf32>, vector<8x8xf32>, vector<8x8xf32> -> vector<8x8xf32>
    %79 = vector.broadcast %3 : vector<1x8xf32> to vector<8x8xf32>
    %80 = arith.addf %78, %79 : vector<8x8xf32>
    %cst_34 = arith.constant dense<0xFF800000> : vector<8xf32>
    %81 = vector.multi_reduction <maximumf>, %80, %cst_34 [1] : vector<8x8xf32> to vector<8xf32>
    %82 = vector.shape_cast %81 : vector<8xf32> to vector<8x1xf32>
    %83 = vector.broadcast %82 : vector<8x1xf32> to vector<8x8xf32>
    %84 = arith.subf %80, %83 : vector<8x8xf32>
    %85 = math.exp %84 : vector<8x8xf32>
    %cst_35 = arith.constant dense<0.000000e+00> : vector<8xf32>
    %86 = vector.multi_reduction <add>, %85, %cst_35 [1] : vector<8x8xf32> to vector<8xf32>
    %87 = vector.shape_cast %86 : vector<8xf32> to vector<8x1xf32>
    %88 = tpu.reciprocal %87 {approx = true} : vector<8x1xf32> -> vector<8x1xf32>
    %89 = vector.broadcast %88 : vector<8x1xf32> to vector<8x8xf32>
    %90 = arith.mulf %85, %89 : vector<8x8xf32>
    %cst_36 = arith.constant dense<0.000000e+00> : vector<8x8xf32>
    %91 = tpu.matmul %90, %77, %cst_36 {dimension_numbers = #tpu.dot_dimension_numbers<[1], [0], [0], [1], [0, 0, 1, 1], [], []>} : vector<8x8xf32>, vector<8x8xf32>, vector<8x8xf32> -> vector<8x8xf32>
    %92 = vector.extract_strided_slice %36 {offsets = [16, 0], sizes = [8, 32], strides = [1, 1]} : vector<32x32xf32> to vector<8x32xf32>
    %cst_37 = arith.constant dense<0.000000e+00> : vector<8x32xf32>
    %93 = tpu.matmul %91, %92, %cst_37 {dimension_numbers = #tpu.dot_dimension_numbers<[1], [0], [0], [1], [0, 0, 1, 1], [], []>} : vector<8x8xf32>, vector<8x32xf32>, vector<8x32xf32> -> vector<8x32xf32>
    %94 = vector.extract_strided_slice %34 {offsets = [0, 24], sizes = [8, 8], strides = [1, 1]} : vector<8x96xf32> to vector<8x8xf32>
    %95 = vector.extract_strided_slice %34 {offsets = [0, 56], sizes = [8, 8], strides = [1, 1]} : vector<8x96xf32> to vector<8x8xf32>
    %96 = vector.extract_strided_slice %34 {offsets = [0, 88], sizes = [8, 8], strides = [1, 1]} : vector<8x96xf32> to vector<8x8xf32>
    %cst_38 = arith.constant dense<0.000000e+00> : vector<8x8xf32>
    %97 = tpu.matmul %94, %95, %cst_38 {dimension_numbers = #tpu.dot_dimension_numbers<[1], [1], [0], [0], [0, 0, 1, 0], [], []>} : vector<8x8xf32>, vector<8x8xf32>, vector<8x8xf32> -> vector<8x8xf32>
    %98 = vector.broadcast %3 : vector<1x8xf32> to vector<8x8xf32>
    %99 = arith.addf %97, %98 : vector<8x8xf32>
    %cst_39 = arith.constant dense<0xFF800000> : vector<8xf32>
    %100 = vector.multi_reduction <maximumf>, %99, %cst_39 [1] : vector<8x8xf32> to vector<8xf32>
    %101 = vector.shape_cast %100 : vector<8xf32> to vector<8x1xf32>
    %102 = vector.broadcast %101 : vector<8x1xf32> to vector<8x8xf32>
    %103 = arith.subf %99, %102 : vector<8x8xf32>
    %104 = math.exp %103 : vector<8x8xf32>
    %cst_40 = arith.constant dense<0.000000e+00> : vector<8xf32>
    %105 = vector.multi_reduction <add>, %104, %cst_40 [1] : vector<8x8xf32> to vector<8xf32>
    %106 = vector.shape_cast %105 : vector<8xf32> to vector<8x1xf32>
    %107 = tpu.reciprocal %106 {approx = true} : vector<8x1xf32> -> vector<8x1xf32>
    %108 = vector.broadcast %107 : vector<8x1xf32> to vector<8x8xf32>
    %109 = arith.mulf %104, %108 : vector<8x8xf32>
    %cst_41 = arith.constant dense<0.000000e+00> : vector<8x8xf32>
    %110 = tpu.matmul %109, %96, %cst_41 {dimension_numbers = #tpu.dot_dimension_numbers<[1], [0], [0], [1], [0, 0, 1, 1], [], []>} : vector<8x8xf32>, vector<8x8xf32>, vector<8x8xf32> -> vector<8x8xf32>
    %111 = vector.extract_strided_slice %36 {offsets = [24, 0], sizes = [8, 32], strides = [1, 1]} : vector<32x32xf32> to vector<8x32xf32>
    %cst_42 = arith.constant dense<0.000000e+00> : vector<8x32xf32>
    %112 = tpu.matmul %110, %111, %cst_42 {dimension_numbers = #tpu.dot_dimension_numbers<[1], [0], [0], [1], [0, 0, 1, 1], [], []>} : vector<8x8xf32>, vector<8x32xf32>, vector<8x32xf32> -> vector<8x32xf32>
    %cst_43 = arith.constant 0.000000e+00 : f32
    %113 = vector.broadcast %cst_43 : f32 to vector<8x32xf32>
    %114 = arith.addf %113, %55 : vector<8x32xf32>
    %115 = arith.addf %114, %74 : vector<8x32xf32>
    %116 = arith.addf %115, %93 : vector<8x32xf32>
    %117 = arith.addf %116, %112 : vector<8x32xf32>
    %c0_44 = arith.constant 0 : index
    %c0_45 = arith.constant 0 : index
    %c0_46 = arith.constant 0 : index
    %118 = vector.load %arg8[%c0_44, %c0_45, %c0_46] : memref<2x1x32xf32, #tpu.memory_space<vmem>>, vector<1x1x32xf32>
    %119 = vector.shape_cast %118 : vector<1x1x32xf32> to vector<1x32xf32>
    %120 = vector.broadcast %119 : vector<1x32xf32> to vector<8x32xf32>
    %121 = arith.addf %117, %120 : vector<8x32xf32>
    %122 = arith.addf %121, %27 : vector<8x32xf32>
    %c0_47 = arith.constant 0 : index
    %c0_48 = arith.constant 0 : index
    %c0_49 = arith.constant 0 : index
    %123 = vector.load %arg9[%c0_47, %c0_48, %c0_49] : memref<2x1x32xf32, #tpu.memory_space<vmem>>, vector<1x1x32xf32>
    %124 = vector.shape_cast %123 : vector<1x1x32xf32> to vector<1x32xf32>
    %c0_50 = arith.constant 0 : index
    %c0_51 = arith.constant 0 : index
    %c0_52 = arith.constant 0 : index
    %125 = vector.load %arg10[%c0_50, %c0_51, %c0_52] : memref<2x1x32xf32, #tpu.memory_space<vmem>>, vector<1x1x32xf32>
    %126 = vector.shape_cast %125 : vector<1x1x32xf32> to vector<1x32xf32>
    %cst_53 = arith.constant dense<0.000000e+00> : vector<8xf32>
    %127 = vector.multi_reduction <add>, %122, %cst_53 [1] : vector<8x32xf32> to vector<8xf32>
    %128 = vector.shape_cast %127 : vector<8xf32> to vector<8x1xf32>
    %cst_54 = arith.constant 3.200000e+01 : f32
    %129 = vector.broadcast %cst_54 : f32 to vector<8x1xf32>
    %130 = arith.divf %128, %129 : vector<8x1xf32>
    %131 = vector.broadcast %130 : vector<8x1xf32> to vector<8x32xf32>
    %132 = arith.subf %122, %131 : vector<8x32xf32>
    %133 = arith.mulf %132, %132 : vector<8x32xf32>
    %cst_55 = arith.constant dense<0.000000e+00> : vector<8xf32>
    %134 = vector.multi_reduction <add>, %133, %cst_55 [1] : vector<8x32xf32> to vector<8xf32>
    %135 = vector.shape_cast %134 : vector<8xf32> to vector<8x1xf32>
    %cst_56 = arith.constant 3.200000e+01 : f32
    %136 = vector.broadcast %cst_56 : f32 to vector<8x1xf32>
    %137 = arith.divf %135, %136 : vector<8x1xf32>
    %138 = vector.broadcast %130 : vector<8x1xf32> to vector<8x32xf32>
    %139 = arith.subf %122, %138 : vector<8x32xf32>
    %cst_57 = arith.constant 9.99999996E-13 : f32
    %140 = vector.broadcast %cst_57 : f32 to vector<8x1xf32>
    %141 = arith.addf %137, %140 : vector<8x1xf32>
    %142 = math.rsqrt %141 : vector<8x1xf32>
    %143 = vector.broadcast %142 : vector<8x1xf32> to vector<8x32xf32>
    %144 = arith.mulf %139, %143 : vector<8x32xf32>
    %145 = vector.broadcast %124 : vector<1x32xf32> to vector<8x32xf32>
    %146 = arith.mulf %144, %145 : vector<8x32xf32>
    %147 = vector.broadcast %126 : vector<1x32xf32> to vector<8x32xf32>
    %148 = arith.addf %146, %147 : vector<8x32xf32>
    %c0_58 = arith.constant 0 : index
    %c0_59 = arith.constant 0 : index
    %c0_60 = arith.constant 0 : index
    %149 = vector.load %arg11[%c0_58, %c0_59, %c0_60] : memref<2x32x64xf32, #tpu.memory_space<vmem>>, vector<1x32x64xf32>
    %150 = vector.shape_cast %149 : vector<1x32x64xf32> to vector<32x64xf32>
    %cst_61 = arith.constant dense<0.000000e+00> : vector<8x64xf32>
    %151 = tpu.matmul %148, %150, %cst_61 {dimension_numbers = #tpu.dot_dimension_numbers<[1], [0], [0], [1], [0, 0, 1, 1], [], []>} : vector<8x32xf32>, vector<32x64xf32>, vector<8x64xf32> -> vector<8x64xf32>
    %c0_62 = arith.constant 0 : index
    %c0_63 = arith.constant 0 : index
    %c0_64 = arith.constant 0 : index
    %152 = vector.load %arg12[%c0_62, %c0_63, %c0_64] : memref<2x1x64xf32, #tpu.memory_space<vmem>>, vector<1x1x64xf32>
    %153 = vector.shape_cast %152 : vector<1x1x64xf32> to vector<1x64xf32>
    %154 = vector.broadcast %153 : vector<1x64xf32> to vector<8x64xf32>
    %155 = arith.addf %151, %154 : vector<8x64xf32>
    %156 = arith.mulf %155, %155 : vector<8x64xf32>
    %157 = arith.mulf %155, %156 : vector<8x64xf32>
    %cst_65 = arith.constant 4.471500e-02 : f32
    %158 = vector.broadcast %cst_65 : f32 to vector<8x64xf32>
    %159 = arith.mulf %158, %157 : vector<8x64xf32>
    %160 = arith.addf %155, %159 : vector<8x64xf32>
    %cst_66 = arith.constant 0.797884583 : f32
    %161 = vector.broadcast %cst_66 : f32 to vector<8x64xf32>
    %162 = arith.mulf %161, %160 : vector<8x64xf32>
    %163 = math.tanh %162 : vector<8x64xf32>
    %cst_67 = arith.constant 1.000000e+00 : f32
    %164 = vector.broadcast %cst_67 : f32 to vector<8x64xf32>
    %165 = arith.addf %164, %163 : vector<8x64xf32>
    %cst_68 = arith.constant 5.000000e-01 : f32
    %166 = vector.broadcast %cst_68 : f32 to vector<8x64xf32>
    %167 = arith.mulf %166, %165 : vector<8x64xf32>
    %168 = arith.mulf %155, %167 : vector<8x64xf32>
    %c0_69 = arith.constant 0 : index
    %c0_70 = arith.constant 0 : index
    %c0_71 = arith.constant 0 : index
    %169 = vector.load %arg13[%c0_69, %c0_70, %c0_71] : memref<2x64x32xf32, #tpu.memory_space<vmem>>, vector<1x64x32xf32>
    %170 = vector.shape_cast %169 : vector<1x64x32xf32> to vector<64x32xf32>
    %cst_72 = arith.constant dense<0.000000e+00> : vector<8x32xf32>
    %171 = tpu.matmul %168, %170, %cst_72 {dimension_numbers = #tpu.dot_dimension_numbers<[1], [0], [0], [1], [0, 0, 1, 1], [], []>} : vector<8x64xf32>, vector<64x32xf32>, vector<8x32xf32> -> vector<8x32xf32>
    %c0_73 = arith.constant 0 : index
    %c0_74 = arith.constant 0 : index
    %c0_75 = arith.constant 0 : index
    %172 = vector.load %arg14[%c0_73, %c0_74, %c0_75] : memref<2x1x32xf32, #tpu.memory_space<vmem>>, vector<1x1x32xf32>
    %173 = vector.shape_cast %172 : vector<1x1x32xf32> to vector<1x32xf32>
    %174 = vector.broadcast %173 : vector<1x32xf32> to vector<8x32xf32>
    %175 = arith.addf %171, %174 : vector<8x32xf32>
    %176 = arith.addf %175, %148 : vector<8x32xf32>
    %c0_76 = arith.constant 0 : index
    %c0_77 = arith.constant 0 : index
    %c0_78 = arith.constant 0 : index
    %177 = vector.load %arg15[%c0_76, %c0_77, %c0_78] : memref<2x1x32xf32, #tpu.memory_space<vmem>>, vector<1x1x32xf32>
    %178 = vector.shape_cast %177 : vector<1x1x32xf32> to vector<1x32xf32>
    %c0_79 = arith.constant 0 : index
    %c0_80 = arith.constant 0 : index
    %c0_81 = arith.constant 0 : index
    %179 = vector.load %arg16[%c0_79, %c0_80, %c0_81] : memref<2x1x32xf32, #tpu.memory_space<vmem>>, vector<1x1x32xf32>
    %180 = vector.shape_cast %179 : vector<1x1x32xf32> to vector<1x32xf32>
    %cst_82 = arith.constant dense<0.000000e+00> : vector<8xf32>
    %181 = vector.multi_reduction <add>, %176, %cst_82 [1] : vector<8x32xf32> to vector<8xf32>
    %182 = vector.shape_cast %181 : vector<8xf32> to vector<8x1xf32>
    %cst_83 = arith.constant 3.200000e+01 : f32
    %183 = vector.broadcast %cst_83 : f32 to vector<8x1xf32>
    %184 = arith.divf %182, %183 : vector<8x1xf32>
    %185 = vector.broadcast %184 : vector<8x1xf32> to vector<8x32xf32>
    %186 = arith.subf %176, %185 : vector<8x32xf32>
    %187 = arith.mulf %186, %186 : vector<8x32xf32>
    %cst_84 = arith.constant dense<0.000000e+00> : vector<8xf32>
    %188 = vector.multi_reduction <add>, %187, %cst_84 [1] : vector<8x32xf32> to vector<8xf32>
    %189 = vector.shape_cast %188 : vector<8xf32> to vector<8x1xf32>
    %cst_85 = arith.constant 3.200000e+01 : f32
    %190 = vector.broadcast %cst_85 : f32 to vector<8x1xf32>
    %191 = arith.divf %189, %190 : vector<8x1xf32>
    %192 = vector.broadcast %184 : vector<8x1xf32> to vector<8x32xf32>
    %193 = arith.subf %176, %192 : vector<8x32xf32>
    %cst_86 = arith.constant 9.99999996E-13 : f32
    %194 = vector.broadcast %cst_86 : f32 to vector<8x1xf32>
    %195 = arith.addf %191, %194 : vector<8x1xf32>
    %196 = math.rsqrt %195 : vector<8x1xf32>
    %197 = vector.broadcast %196 : vector<8x1xf32> to vector<8x32xf32>
    %198 = arith.mulf %193, %197 : vector<8x32xf32>
    %199 = vector.broadcast %178 : vector<1x32xf32> to vector<8x32xf32>
    %200 = arith.mulf %198, %199 : vector<8x32xf32>
    %201 = vector.broadcast %180 : vector<1x32xf32> to vector<8x32xf32>
    %202 = arith.addf %200, %201 : vector<8x32xf32>
    %c1 = arith.constant 1 : index
    %c0_87 = arith.constant 0 : index
    %c0_88 = arith.constant 0 : index
    %203 = vector.load %arg5[%c1, %c0_87, %c0_88] : memref<2x32x96xf32, #tpu.memory_space<vmem>>, vector<1x32x96xf32>
    %204 = vector.shape_cast %203 : vector<1x32x96xf32> to vector<32x96xf32>
    %cst_89 = arith.constant dense<0.000000e+00> : vector<8x96xf32>
    %205 = tpu.matmul %202, %204, %cst_89 {dimension_numbers = #tpu.dot_dimension_numbers<[1], [0], [0], [1], [0, 0, 1, 1], [], []>} : vector<8x32xf32>, vector<32x96xf32>, vector<8x96xf32> -> vector<8x96xf32>
    %c1_90 = arith.constant 1 : index
    %c0_91 = arith.constant 0 : index
    %c0_92 = arith.constant 0 : index
    %206 = vector.load %arg6[%c1_90, %c0_91, %c0_92] : memref<2x1x96xf32, #tpu.memory_space<vmem>>, vector<1x1x96xf32>
    %207 = vector.shape_cast %206 : vector<1x1x96xf32> to vector<1x96xf32>
    %208 = vector.broadcast %207 : vector<1x96xf32> to vector<8x96xf32>
    %209 = arith.addf %205, %208 : vector<8x96xf32>
    %c1_93 = arith.constant 1 : index
    %c0_94 = arith.constant 0 : index
    %c0_95 = arith.constant 0 : index
    %210 = vector.load %arg7[%c1_93, %c0_94, %c0_95] : memref<2x32x32xf32, #tpu.memory_space<vmem>>, vector<1x32x32xf32>
    %211 = vector.shape_cast %210 : vector<1x32x32xf32> to vector<32x32xf32>
    %212 = vector.extract_strided_slice %209 {offsets = [0, 0], sizes = [8, 8], strides = [1, 1]} : vector<8x96xf32> to vector<8x8xf32>
    %213 = vector.extract_strided_slice %209 {offsets = [0, 32], sizes = [8, 8], strides = [1, 1]} : vector<8x96xf32> to vector<8x8xf32>
    %214 = vector.extract_strided_slice %209 {offsets = [0, 64], sizes = [8, 8], strides = [1, 1]} : vector<8x96xf32> to vector<8x8xf32>
    %cst_96 = arith.constant dense<0.000000e+00> : vector<8x8xf32>
    %215 = tpu.matmul %212, %213, %cst_96 {dimension_numbers = #tpu.dot_dimension_numbers<[1], [1], [0], [0], [0, 0, 1, 0], [], []>} : vector<8x8xf32>, vector<8x8xf32>, vector<8x8xf32> -> vector<8x8xf32>
    %216 = vector.broadcast %3 : vector<1x8xf32> to vector<8x8xf32>
    %217 = arith.addf %215, %216 : vector<8x8xf32>
    %cst_97 = arith.constant dense<0xFF800000> : vector<8xf32>
    %218 = vector.multi_reduction <maximumf>, %217, %cst_97 [1] : vector<8x8xf32> to vector<8xf32>
    %219 = vector.shape_cast %218 : vector<8xf32> to vector<8x1xf32>
    %220 = vector.broadcast %219 : vector<8x1xf32> to vector<8x8xf32>
    %221 = arith.subf %217, %220 : vector<8x8xf32>
    %222 = math.exp %221 : vector<8x8xf32>
    %cst_98 = arith.constant dense<0.000000e+00> : vector<8xf32>
    %223 = vector.multi_reduction <add>, %222, %cst_98 [1] : vector<8x8xf32> to vector<8xf32>
    %224 = vector.shape_cast %223 : vector<8xf32> to vector<8x1xf32>
    %225 = tpu.reciprocal %224 {approx = true} : vector<8x1xf32> -> vector<8x1xf32>
    %226 = vector.broadcast %225 : vector<8x1xf32> to vector<8x8xf32>
    %227 = arith.mulf %222, %226 : vector<8x8xf32>
    %cst_99 = arith.constant dense<0.000000e+00> : vector<8x8xf32>
    %228 = tpu.matmul %227, %214, %cst_99 {dimension_numbers = #tpu.dot_dimension_numbers<[1], [0], [0], [1], [0, 0, 1, 1], [], []>} : vector<8x8xf32>, vector<8x8xf32>, vector<8x8xf32> -> vector<8x8xf32>
    %229 = vector.extract_strided_slice %211 {offsets = [0, 0], sizes = [8, 32], strides = [1, 1]} : vector<32x32xf32> to vector<8x32xf32>
    %cst_100 = arith.constant dense<0.000000e+00> : vector<8x32xf32>
    %230 = tpu.matmul %228, %229, %cst_100 {dimension_numbers = #tpu.dot_dimension_numbers<[1], [0], [0], [1], [0, 0, 1, 1], [], []>} : vector<8x8xf32>, vector<8x32xf32>, vector<8x32xf32> -> vector<8x32xf32>
    %231 = vector.extract_strided_slice %209 {offsets = [0, 8], sizes = [8, 8], strides = [1, 1]} : vector<8x96xf32> to vector<8x8xf32>
    %232 = vector.extract_strided_slice %209 {offsets = [0, 40], sizes = [8, 8], strides = [1, 1]} : vector<8x96xf32> to vector<8x8xf32>
    %233 = vector.extract_strided_slice %209 {offsets = [0, 72], sizes = [8, 8], strides = [1, 1]} : vector<8x96xf32> to vector<8x8xf32>
    %cst_101 = arith.constant dense<0.000000e+00> : vector<8x8xf32>
    %234 = tpu.matmul %231, %232, %cst_101 {dimension_numbers = #tpu.dot_dimension_numbers<[1], [1], [0], [0], [0, 0, 1, 0], [], []>} : vector<8x8xf32>, vector<8x8xf32>, vector<8x8xf32> -> vector<8x8xf32>
    %235 = vector.broadcast %3 : vector<1x8xf32> to vector<8x8xf32>
    %236 = arith.addf %234, %235 : vector<8x8xf32>
    %cst_102 = arith.constant dense<0xFF800000> : vector<8xf32>
    %237 = vector.multi_reduction <maximumf>, %236, %cst_102 [1] : vector<8x8xf32> to vector<8xf32>
    %238 = vector.shape_cast %237 : vector<8xf32> to vector<8x1xf32>
    %239 = vector.broadcast %238 : vector<8x1xf32> to vector<8x8xf32>
    %240 = arith.subf %236, %239 : vector<8x8xf32>
    %241 = math.exp %240 : vector<8x8xf32>
    %cst_103 = arith.constant dense<0.000000e+00> : vector<8xf32>
    %242 = vector.multi_reduction <add>, %241, %cst_103 [1] : vector<8x8xf32> to vector<8xf32>
    %243 = vector.shape_cast %242 : vector<8xf32> to vector<8x1xf32>
    %244 = tpu.reciprocal %243 {approx = true} : vector<8x1xf32> -> vector<8x1xf32>
    %245 = vector.broadcast %244 : vector<8x1xf32> to vector<8x8xf32>
    %246 = arith.mulf %241, %245 : vector<8x8xf32>
    %cst_104 = arith.constant dense<0.000000e+00> : vector<8x8xf32>
    %247 = tpu.matmul %246, %233, %cst_104 {dimension_numbers = #tpu.dot_dimension_numbers<[1], [0], [0], [1], [0, 0, 1, 1], [], []>} : vector<8x8xf32>, vector<8x8xf32>, vector<8x8xf32> -> vector<8x8xf32>
    %248 = vector.extract_strided_slice %211 {offsets = [8, 0], sizes = [8, 32], strides = [1, 1]} : vector<32x32xf32> to vector<8x32xf32>
    %cst_105 = arith.constant dense<0.000000e+00> : vector<8x32xf32>
    %249 = tpu.matmul %247, %248, %cst_105 {dimension_numbers = #tpu.dot_dimension_numbers<[1], [0], [0], [1], [0, 0, 1, 1], [], []>} : vector<8x8xf32>, vector<8x32xf32>, vector<8x32xf32> -> vector<8x32xf32>
    %250 = vector.extract_strided_slice %209 {offsets = [0, 16], sizes = [8, 8], strides = [1, 1]} : vector<8x96xf32> to vector<8x8xf32>
    %251 = vector.extract_strided_slice %209 {offsets = [0, 48], sizes = [8, 8], strides = [1, 1]} : vector<8x96xf32> to vector<8x8xf32>
    %252 = vector.extract_strided_slice %209 {offsets = [0, 80], sizes = [8, 8], strides = [1, 1]} : vector<8x96xf32> to vector<8x8xf32>
    %cst_106 = arith.constant dense<0.000000e+00> : vector<8x8xf32>
    %253 = tpu.matmul %250, %251, %cst_106 {dimension_numbers = #tpu.dot_dimension_numbers<[1], [1], [0], [0], [0, 0, 1, 0], [], []>} : vector<8x8xf32>, vector<8x8xf32>, vector<8x8xf32> -> vector<8x8xf32>
    %254 = vector.broadcast %3 : vector<1x8xf32> to vector<8x8xf32>
    %255 = arith.addf %253, %254 : vector<8x8xf32>
    %cst_107 = arith.constant dense<0xFF800000> : vector<8xf32>
    %256 = vector.multi_reduction <maximumf>, %255, %cst_107 [1] : vector<8x8xf32> to vector<8xf32>
    %257 = vector.shape_cast %256 : vector<8xf32> to vector<8x1xf32>
    %258 = vector.broadcast %257 : vector<8x1xf32> to vector<8x8xf32>
    %259 = arith.subf %255, %258 : vector<8x8xf32>
    %260 = math.exp %259 : vector<8x8xf32>
    %cst_108 = arith.constant dense<0.000000e+00> : vector<8xf32>
    %261 = vector.multi_reduction <add>, %260, %cst_108 [1] : vector<8x8xf32> to vector<8xf32>
    %262 = vector.shape_cast %261 : vector<8xf32> to vector<8x1xf32>
    %263 = tpu.reciprocal %262 {approx = true} : vector<8x1xf32> -> vector<8x1xf32>
    %264 = vector.broadcast %263 : vector<8x1xf32> to vector<8x8xf32>
    %265 = arith.mulf %260, %264 : vector<8x8xf32>
    %cst_109 = arith.constant dense<0.000000e+00> : vector<8x8xf32>
    %266 = tpu.matmul %265, %252, %cst_109 {dimension_numbers = #tpu.dot_dimension_numbers<[1], [0], [0], [1], [0, 0, 1, 1], [], []>} : vector<8x8xf32>, vector<8x8xf32>, vector<8x8xf32> -> vector<8x8xf32>
    %267 = vector.extract_strided_slice %211 {offsets = [16, 0], sizes = [8, 32], strides = [1, 1]} : vector<32x32xf32> to vector<8x32xf32>
    %cst_110 = arith.constant dense<0.000000e+00> : vector<8x32xf32>
    %268 = tpu.matmul %266, %267, %cst_110 {dimension_numbers = #tpu.dot_dimension_numbers<[1], [0], [0], [1], [0, 0, 1, 1], [], []>} : vector<8x8xf32>, vector<8x32xf32>, vector<8x32xf32> -> vector<8x32xf32>
    %269 = vector.extract_strided_slice %209 {offsets = [0, 24], sizes = [8, 8], strides = [1, 1]} : vector<8x96xf32> to vector<8x8xf32>
    %270 = vector.extract_strided_slice %209 {offsets = [0, 56], sizes = [8, 8], strides = [1, 1]} : vector<8x96xf32> to vector<8x8xf32>
    %271 = vector.extract_strided_slice %209 {offsets = [0, 88], sizes = [8, 8], strides = [1, 1]} : vector<8x96xf32> to vector<8x8xf32>
    %cst_111 = arith.constant dense<0.000000e+00> : vector<8x8xf32>
    %272 = tpu.matmul %269, %270, %cst_111 {dimension_numbers = #tpu.dot_dimension_numbers<[1], [1], [0], [0], [0, 0, 1, 0], [], []>} : vector<8x8xf32>, vector<8x8xf32>, vector<8x8xf32> -> vector<8x8xf32>
    %273 = vector.broadcast %3 : vector<1x8xf32> to vector<8x8xf32>
    %274 = arith.addf %272, %273 : vector<8x8xf32>
    %cst_112 = arith.constant dense<0xFF800000> : vector<8xf32>
    %275 = vector.multi_reduction <maximumf>, %274, %cst_112 [1] : vector<8x8xf32> to vector<8xf32>
    %276 = vector.shape_cast %275 : vector<8xf32> to vector<8x1xf32>
    %277 = vector.broadcast %276 : vector<8x1xf32> to vector<8x8xf32>
    %278 = arith.subf %274, %277 : vector<8x8xf32>
    %279 = math.exp %278 : vector<8x8xf32>
    %cst_113 = arith.constant dense<0.000000e+00> : vector<8xf32>
    %280 = vector.multi_reduction <add>, %279, %cst_113 [1] : vector<8x8xf32> to vector<8xf32>
    %281 = vector.shape_cast %280 : vector<8xf32> to vector<8x1xf32>
    %282 = tpu.reciprocal %281 {approx = true} : vector<8x1xf32> -> vector<8x1xf32>
    %283 = vector.broadcast %282 : vector<8x1xf32> to vector<8x8xf32>
    %284 = arith.mulf %279, %283 : vector<8x8xf32>
    %cst_114 = arith.constant dense<0.000000e+00> : vector<8x8xf32>
    %285 = tpu.matmul %284, %271, %cst_114 {dimension_numbers = #tpu.dot_dimension_numbers<[1], [0], [0], [1], [0, 0, 1, 1], [], []>} : vector<8x8xf32>, vector<8x8xf32>, vector<8x8xf32> -> vector<8x8xf32>
    %286 = vector.extract_strided_slice %211 {offsets = [24, 0], sizes = [8, 32], strides = [1, 1]} : vector<32x32xf32> to vector<8x32xf32>
    %cst_115 = arith.constant dense<0.000000e+00> : vector<8x32xf32>
    %287 = tpu.matmul %285, %286, %cst_115 {dimension_numbers = #tpu.dot_dimension_numbers<[1], [0], [0], [1], [0, 0, 1, 1], [], []>} : vector<8x8xf32>, vector<8x32xf32>, vector<8x32xf32> -> vector<8x32xf32>
    %cst_116 = arith.constant 0.000000e+00 : f32
    %288 = vector.broadcast %cst_116 : f32 to vector<8x32xf32>
    %289 = arith.addf %288, %230 : vector<8x32xf32>
    %290 = arith.addf %289, %249 : vector<8x32xf32>
    %291 = arith.addf %290, %268 : vector<8x32xf32>
    %292 = arith.addf %291, %287 : vector<8x32xf32>
    %c1_117 = arith.constant 1 : index
    %c0_118 = arith.constant 0 : index
    %c0_119 = arith.constant 0 : index
    %293 = vector.load %arg8[%c1_117, %c0_118, %c0_119] : memref<2x1x32xf32, #tpu.memory_space<vmem>>, vector<1x1x32xf32>
    %294 = vector.shape_cast %293 : vector<1x1x32xf32> to vector<1x32xf32>
    %295 = vector.broadcast %294 : vector<1x32xf32> to vector<8x32xf32>
    %296 = arith.addf %292, %295 : vector<8x32xf32>
    %297 = arith.addf %296, %202 : vector<8x32xf32>
    %c1_120 = arith.constant 1 : index
    %c0_121 = arith.constant 0 : index
    %c0_122 = arith.constant 0 : index
    %298 = vector.load %arg9[%c1_120, %c0_121, %c0_122] : memref<2x1x32xf32, #tpu.memory_space<vmem>>, vector<1x1x32xf32>
    %299 = vector.shape_cast %298 : vector<1x1x32xf32> to vector<1x32xf32>
    %c1_123 = arith.constant 1 : index
    %c0_124 = arith.constant 0 : index
    %c0_125 = arith.constant 0 : index
    %300 = vector.load %arg10[%c1_123, %c0_124, %c0_125] : memref<2x1x32xf32, #tpu.memory_space<vmem>>, vector<1x1x32xf32>
    %301 = vector.shape_cast %300 : vector<1x1x32xf32> to vector<1x32xf32>
    %cst_126 = arith.constant dense<0.000000e+00> : vector<8xf32>
    %302 = vector.multi_reduction <add>, %297, %cst_126 [1] : vector<8x32xf32> to vector<8xf32>
    %303 = vector.shape_cast %302 : vector<8xf32> to vector<8x1xf32>
    %cst_127 = arith.constant 3.200000e+01 : f32
    %304 = vector.broadcast %cst_127 : f32 to vector<8x1xf32>
    %305 = arith.divf %303, %304 : vector<8x1xf32>
    %306 = vector.broadcast %305 : vector<8x1xf32> to vector<8x32xf32>
    %307 = arith.subf %297, %306 : vector<8x32xf32>
    %308 = arith.mulf %307, %307 : vector<8x32xf32>
    %cst_128 = arith.constant dense<0.000000e+00> : vector<8xf32>
    %309 = vector.multi_reduction <add>, %308, %cst_128 [1] : vector<8x32xf32> to vector<8xf32>
    %310 = vector.shape_cast %309 : vector<8xf32> to vector<8x1xf32>
    %cst_129 = arith.constant 3.200000e+01 : f32
    %311 = vector.broadcast %cst_129 : f32 to vector<8x1xf32>
    %312 = arith.divf %310, %311 : vector<8x1xf32>
    %313 = vector.broadcast %305 : vector<8x1xf32> to vector<8x32xf32>
    %314 = arith.subf %297, %313 : vector<8x32xf32>
    %cst_130 = arith.constant 9.99999996E-13 : f32
    %315 = vector.broadcast %cst_130 : f32 to vector<8x1xf32>
    %316 = arith.addf %312, %315 : vector<8x1xf32>
    %317 = math.rsqrt %316 : vector<8x1xf32>
    %318 = vector.broadcast %317 : vector<8x1xf32> to vector<8x32xf32>
    %319 = arith.mulf %314, %318 : vector<8x32xf32>
    %320 = vector.broadcast %299 : vector<1x32xf32> to vector<8x32xf32>
    %321 = arith.mulf %319, %320 : vector<8x32xf32>
    %322 = vector.broadcast %301 : vector<1x32xf32> to vector<8x32xf32>
    %323 = arith.addf %321, %322 : vector<8x32xf32>
    %c1_131 = arith.constant 1 : index
    %c0_132 = arith.constant 0 : index
    %c0_133 = arith.constant 0 : index
    %324 = vector.load %arg11[%c1_131, %c0_132, %c0_133] : memref<2x32x64xf32, #tpu.memory_space<vmem>>, vector<1x32x64xf32>
    %325 = vector.shape_cast %324 : vector<1x32x64xf32> to vector<32x64xf32>
    %cst_134 = arith.constant dense<0.000000e+00> : vector<8x64xf32>
    %326 = tpu.matmul %323, %325, %cst_134 {dimension_numbers = #tpu.dot_dimension_numbers<[1], [0], [0], [1], [0, 0, 1, 1], [], []>} : vector<8x32xf32>, vector<32x64xf32>, vector<8x64xf32> -> vector<8x64xf32>
    %c1_135 = arith.constant 1 : index
    %c0_136 = arith.constant 0 : index
    %c0_137 = arith.constant 0 : index
    %327 = vector.load %arg12[%c1_135, %c0_136, %c0_137] : memref<2x1x64xf32, #tpu.memory_space<vmem>>, vector<1x1x64xf32>
    %328 = vector.shape_cast %327 : vector<1x1x64xf32> to vector<1x64xf32>
    %329 = vector.broadcast %328 : vector<1x64xf32> to vector<8x64xf32>
    %330 = arith.addf %326, %329 : vector<8x64xf32>
    %331 = arith.mulf %330, %330 : vector<8x64xf32>
    %332 = arith.mulf %330, %331 : vector<8x64xf32>
    %cst_138 = arith.constant 4.471500e-02 : f32
    %333 = vector.broadcast %cst_138 : f32 to vector<8x64xf32>
    %334 = arith.mulf %333, %332 : vector<8x64xf32>
    %335 = arith.addf %330, %334 : vector<8x64xf32>
    %cst_139 = arith.constant 0.797884583 : f32
    %336 = vector.broadcast %cst_139 : f32 to vector<8x64xf32>
    %337 = arith.mulf %336, %335 : vector<8x64xf32>
    %338 = math.tanh %337 : vector<8x64xf32>
    %cst_140 = arith.constant 1.000000e+00 : f32
    %339 = vector.broadcast %cst_140 : f32 to vector<8x64xf32>
    %340 = arith.addf %339, %338 : vector<8x64xf32>
    %cst_141 = arith.constant 5.000000e-01 : f32
    %341 = vector.broadcast %cst_141 : f32 to vector<8x64xf32>
    %342 = arith.mulf %341, %340 : vector<8x64xf32>
    %343 = arith.mulf %330, %342 : vector<8x64xf32>
    %c1_142 = arith.constant 1 : index
    %c0_143 = arith.constant 0 : index
    %c0_144 = arith.constant 0 : index
    %344 = vector.load %arg13[%c1_142, %c0_143, %c0_144] : memref<2x64x32xf32, #tpu.memory_space<vmem>>, vector<1x64x32xf32>
    %345 = vector.shape_cast %344 : vector<1x64x32xf32> to vector<64x32xf32>
    %cst_145 = arith.constant dense<0.000000e+00> : vector<8x32xf32>
    %346 = tpu.matmul %343, %345, %cst_145 {dimension_numbers = #tpu.dot_dimension_numbers<[1], [0], [0], [1], [0, 0, 1, 1], [], []>} : vector<8x64xf32>, vector<64x32xf32>, vector<8x32xf32> -> vector<8x32xf32>
    %c1_146 = arith.constant 1 : index
    %c0_147 = arith.constant 0 : index
    %c0_148 = arith.constant 0 : index
    %347 = vector.load %arg14[%c1_146, %c0_147, %c0_148] : memref<2x1x32xf32, #tpu.memory_space<vmem>>, vector<1x1x32xf32>
    %348 = vector.shape_cast %347 : vector<1x1x32xf32> to vector<1x32xf32>
    %349 = vector.broadcast %348 : vector<1x32xf32> to vector<8x32xf32>
    %350 = arith.addf %346, %349 : vector<8x32xf32>
    %351 = arith.addf %350, %323 : vector<8x32xf32>
    %c1_149 = arith.constant 1 : index
    %c0_150 = arith.constant 0 : index
    %c0_151 = arith.constant 0 : index
    %352 = vector.load %arg15[%c1_149, %c0_150, %c0_151] : memref<2x1x32xf32, #tpu.memory_space<vmem>>, vector<1x1x32xf32>
    %353 = vector.shape_cast %352 : vector<1x1x32xf32> to vector<1x32xf32>
    %c1_152 = arith.constant 1 : index
    %c0_153 = arith.constant 0 : index
    %c0_154 = arith.constant 0 : index
    %354 = vector.load %arg16[%c1_152, %c0_153, %c0_154] : memref<2x1x32xf32, #tpu.memory_space<vmem>>, vector<1x1x32xf32>
    %355 = vector.shape_cast %354 : vector<1x1x32xf32> to vector<1x32xf32>
    %cst_155 = arith.constant dense<0.000000e+00> : vector<8xf32>
    %356 = vector.multi_reduction <add>, %351, %cst_155 [1] : vector<8x32xf32> to vector<8xf32>
    %357 = vector.shape_cast %356 : vector<8xf32> to vector<8x1xf32>
    %cst_156 = arith.constant 3.200000e+01 : f32
    %358 = vector.broadcast %cst_156 : f32 to vector<8x1xf32>
    %359 = arith.divf %357, %358 : vector<8x1xf32>
    %360 = vector.broadcast %359 : vector<8x1xf32> to vector<8x32xf32>
    %361 = arith.subf %351, %360 : vector<8x32xf32>
    %362 = arith.mulf %361, %361 : vector<8x32xf32>
    %cst_157 = arith.constant dense<0.000000e+00> : vector<8xf32>
    %363 = vector.multi_reduction <add>, %362, %cst_157 [1] : vector<8x32xf32> to vector<8xf32>
    %364 = vector.shape_cast %363 : vector<8xf32> to vector<8x1xf32>
    %cst_158 = arith.constant 3.200000e+01 : f32
    %365 = vector.broadcast %cst_158 : f32 to vector<8x1xf32>
    %366 = arith.divf %364, %365 : vector<8x1xf32>
    %367 = vector.broadcast %359 : vector<8x1xf32> to vector<8x32xf32>
    %368 = arith.subf %351, %367 : vector<8x32xf32>
    %cst_159 = arith.constant 9.99999996E-13 : f32
    %369 = vector.broadcast %cst_159 : f32 to vector<8x1xf32>
    %370 = arith.addf %366, %369 : vector<8x1xf32>
    %371 = math.rsqrt %370 : vector<8x1xf32>
    %372 = vector.broadcast %371 : vector<8x1xf32> to vector<8x32xf32>
    %373 = arith.mulf %368, %372 : vector<8x32xf32>
    %374 = vector.broadcast %353 : vector<1x32xf32> to vector<8x32xf32>
    %375 = arith.mulf %373, %374 : vector<8x32xf32>
    %376 = vector.broadcast %355 : vector<1x32xf32> to vector<8x32xf32>
    %377 = arith.addf %375, %376 : vector<8x32xf32>
    %378 = vector.extract_strided_slice %377 {offsets = [0, 0], sizes = [1, 32], strides = [1, 1]} : vector<8x32xf32> to vector<1x32xf32>
    %c0_160 = arith.constant 0 : index
    %c0_161 = arith.constant 0 : index
    %379 = vector.load %arg17[%c0_160, %c0_161] : memref<32x32xf32, #tpu.memory_space<vmem>>, vector<32x32xf32>
    %cst_162 = arith.constant dense<0.000000e+00> : vector<1x32xf32>
    %380 = tpu.matmul %378, %379, %cst_162 {dimension_numbers = #tpu.dot_dimension_numbers<[1], [0], [0], [1], [0, 0, 1, 1], [], []>} : vector<1x32xf32>, vector<32x32xf32>, vector<1x32xf32> -> vector<1x32xf32>
    %c0_163 = arith.constant 0 : index
    %c0_164 = arith.constant 0 : index
    %381 = vector.load %arg18[%c0_163, %c0_164] : memref<1x32xf32, #tpu.memory_space<vmem>>, vector<1x32xf32>
    %382 = arith.addf %380, %381 : vector<1x32xf32>
    %383 = math.tanh %382 : vector<1x32xf32>
    %c0_165 = arith.constant 0 : index
    %c0_166 = arith.constant 0 : index
    %384 = vector.load %arg19[%c0_165, %c0_166] : memref<32x3xf32, #tpu.memory_space<vmem>>, vector<32x3xf32>
    %cst_167 = arith.constant dense<0.000000e+00> : vector<1x3xf32>
    %385 = tpu.matmul %383, %384, %cst_167 {dimension_numbers = #tpu.dot_dimension_numbers<[1], [0], [0], [1], [0, 0, 1, 1], [], []>} : vector<1x32xf32>, vector<32x3xf32>, vector<1x3xf32> -> vector<1x3xf32>
    %c0_168 = arith.constant 0 : index
    %c0_169 = arith.constant 0 : index
    %386 = vector.load %arg20[%c0_168, %c0_169] : memref<1x3xf32, #tpu.memory_space<vmem>>, vector<1x3xf32>
    %387 = arith.addf %385, %386 : vector<1x3xf32>
    %cst_170 = arith.constant dense<0xFF800000> : vector<1xf32>
    %388 = vector.multi_reduction <maximumf>, %387, %cst_170 [1] : vector<1x3xf32> to vector<1xf32>
    %389 = vector.shape_cast %388 : vector<1xf32> to vector<1x1xf32>
    %390 = vector.broadcast %389 : vector<1x1xf32> to vector<1x3xf32>
    %391 = arith.subf %387, %390 : vector<1x3xf32>
    %392 = math.exp %391 : vector<1x3xf32>
    %cst_171 = arith.constant dense<0.000000e+00> : vector<1xf32>
    %393 = vector.multi_reduction <add>, %392, %cst_171 [1] : vector<1x3xf32> to vector<1xf32>
    %394 = vector.shape_cast %393 : vector<1xf32> to vector<1x1xf32>
    %395 = vector.broadcast %394 : vector<1x1xf32> to vector<1x3xf32>
    %396 = arith.divf %392, %395 : vector<1x3xf32>
    %c0_172 = arith.constant 0 : index
    %c0_173 = arith.constant 0 : index
    %c0_174 = arith.constant 0 : index
    %397 = vector.load %arg21[%c0_172, %c0_173, %c0_174] : memref<1x1x3xf32, #tpu.memory_space<vmem>>, vector<1x1x3xf32>
    %398 = vector.shape_cast %397 : vector<1x1x3xf32> to vector<1x3xf32>
    %399 = vector.shape_cast %396 : vector<1x3xf32> to vector<1x1x3xf32>
    tpu.vector_store %arg21[%c0_172, %c0_173, %c0_174], %399 {strides = array<i32>} : memref<1x1x3xf32, #tpu.memory_space<vmem>>, vector<1x1x3xf32>,
    return
  }
  func.func @transform_0(%arg0: i32) -> (i32, i32, i32) {
    %c0_i32 = arith.constant 0 : i32
    %c0_i32_0 = arith.constant 0 : i32
    %c0_i32_1 = arith.constant 0 : i32
    return %arg0, %c0_i32, %c0_i32_0 : i32, i32, i32
  }
  func.func @transform_1(%arg0: i32) -> (i32, i32, i32) {
    %c0_i32 = arith.constant 0 : i32
    %c0_i32_0 = arith.constant 0 : i32
    %c0_i32_1 = arith.constant 0 : i32
    return %arg0, %c0_i32, %c0_i32_0 : i32, i32, i32
  }
  func.func @transform_2(%arg0: i32) -> (i32, i32) {
    %c0_i32 = arith.constant 0 : i32
    %c0_i32_0 = arith.constant 0 : i32
    %c0_i32_1 = arith.constant 0 : i32
    return %c0_i32, %c0_i32_0 : i32, i32
  }
  func.func @transform_3(%arg0: i32) -> (i32, i32) {
    %c0_i32 = arith.constant 0 : i32
    %c0_i32_0 = arith.constant 0 : i32
    %c0_i32_1 = arith.constant 0 : i32
    return %c0_i32, %c0_i32_0 : i32, i32
  }
  func.func @transform_4(%arg0: i32) -> (i32, i32, i32) {
    %c0_i32 = arith.constant 0 : i32
    %c0_i32_0 = arith.constant 0 : i32
    %c0_i32_1 = arith.constant 0 : i32
    %c0_i32_2 = arith.constant 0 : i32
    return %c0_i32, %c0_i32_0, %c0_i32_1 : i32, i32, i32
  }
  func.func @transform_5(%arg0: i32) -> (i32, i32, i32) {
    %c0_i32 = arith.constant 0 : i32
    %c0_i32_0 = arith.constant 0 : i32
    %c0_i32_1 = arith.constant 0 : i32
    %c0_i32_2 = arith.constant 0 : i32
    return %c0_i32, %c0_i32_0, %c0_i32_1 : i32, i32, i32
  }
  func.func @transform_6(%arg0: i32) -> (i32, i32, i32) {
    %c0_i32 = arith.constant 0 : i32
    %c0_i32_0 = arith.constant 0 : i32
    %c0_i32_1 = arith.constant 0 : i32
    %c0_i32_2 = arith.constant 0 : i32
    return %c0_i32, %c0_i32_0, %c0_i32_1 : i32, i32, i32
  }
  func.func @transform_7(%arg0: i32) -> (i32, i32, i32) {
    %c0_i32 = arith.constant 0 : i32
    %c0_i32_0 = arith.constant 0 : i32
    %c0_i32_1 = arith.constant 0 : i32
    %c0_i32_2 = arith.constant 0 : i32
    return %c0_i32, %c0_i32_0, %c0_i32_1 : i32, i32, i32
  }
  func.func @transform_8(%arg0: i32) -> (i32, i32, i32) {
    %c0_i32 = arith.constant 0 : i32
    %c0_i32_0 = arith.constant 0 : i32
    %c0_i32_1 = arith.constant 0 : i32
    %c0_i32_2 = arith.constant 0 : i32
    return %c0_i32, %c0_i32_0, %c0_i32_1 : i32, i32, i32
  }
  func.func @transform_9(%arg0: i32) -> (i32, i32, i32) {
    %c0_i32 = arith.constant 0 : i32
    %c0_i32_0 = arith.constant 0 : i32
    %c0_i32_1 = arith.constant 0 : i32
    %c0_i32_2 = arith.constant 0 : i32
    return %c0_i32, %c0_i32_0, %c0_i32_1 : i32, i32, i32
  }
  func.func @transform_10(%arg0: i32) -> (i32, i32, i32) {
    %c0_i32 = arith.constant 0 : i32
    %c0_i32_0 = arith.constant 0 : i32
    %c0_i32_1 = arith.constant 0 : i32
    %c0_i32_2 = arith.constant 0 : i32
    return %c0_i32, %c0_i32_0, %c0_i32_1 : i32, i32, i32
  }
  func.func @transform_11(%arg0: i32) -> (i32, i32, i32) {
    %c0_i32 = arith.constant 0 : i32
    %c0_i32_0 = arith.constant 0 : i32
    %c0_i32_1 = arith.constant 0 : i32
    %c0_i32_2 = arith.constant 0 : i32
    return %c0_i32, %c0_i32_0, %c0_i32_1 : i32, i32, i32
  }
  func.func @transform_12(%arg0: i32) -> (i32, i32, i32) {
    %c0_i32 = arith.constant 0 : i32
    %c0_i32_0 = arith.constant 0 : i32
    %c0_i32_1 = arith.constant 0 : i32
    %c0_i32_2 = arith.constant 0 : i32
    return %c0_i32, %c0_i32_0, %c0_i32_1 : i32, i32, i32
  }
  func.func @transform_13(%arg0: i32) -> (i32, i32, i32) {
    %c0_i32 = arith.constant 0 : i32
    %c0_i32_0 = arith.constant 0 : i32
    %c0_i32_1 = arith.constant 0 : i32
    %c0_i32_2 = arith.constant 0 : i32
    return %c0_i32, %c0_i32_0, %c0_i32_1 : i32, i32, i32
  }
  func.func @transform_14(%arg0: i32) -> (i32, i32, i32) {
    %c0_i32 = arith.constant 0 : i32
    %c0_i32_0 = arith.constant 0 : i32
    %c0_i32_1 = arith.constant 0 : i32
    %c0_i32_2 = arith.constant 0 : i32
    return %c0_i32, %c0_i32_0, %c0_i32_1 : i32, i32, i32
  }
  func.func @transform_15(%arg0: i32) -> (i32, i32, i32) {
    %c0_i32 = arith.constant 0 : i32
    %c0_i32_0 = arith.constant 0 : i32
    %c0_i32_1 = arith.constant 0 : i32
    %c0_i32_2 = arith.constant 0 : i32
    return %c0_i32, %c0_i32_0, %c0_i32_1 : i32, i32, i32
  }
  func.func @transform_16(%arg0: i32) -> (i32, i32) {
    %c0_i32 = arith.constant 0 : i32
    %c0_i32_0 = arith.constant 0 : i32
    %c0_i32_1 = arith.constant 0 : i32
    return %c0_i32, %c0_i32_0 : i32, i32
  }
  func.func @transform_17(%arg0: i32) -> (i32, i32) {
    %c0_i32 = arith.constant 0 : i32
    %c0_i32_0 = arith.constant 0 : i32
    %c0_i32_1 = arith.constant 0 : i32
    return %c0_i32, %c0_i32_0 : i32, i32
  }
  func.func @transform_18(%arg0: i32) -> (i32, i32) {
    %c0_i32 = arith.constant 0 : i32
    %c0_i32_0 = arith.constant 0 : i32
    %c0_i32_1 = arith.constant 0 : i32
    return %c0_i32, %c0_i32_0 : i32, i32
  }
  func.func @transform_19(%arg0: i32) -> (i32, i32) {
    %c0_i32 = arith.constant 0 : i32
    %c0_i32_0 = arith.constant 0 : i32
    %c0_i32_1 = arith.constant 0 : i32
    return %c0_i32, %c0_i32_0 : i32, i32
  }
  func.func @transform_20(%arg0: i32) -> (i32, i32, i32) {
    %c0_i32 = arith.constant 0 : i32
    %c0_i32_0 = arith.constant 0 : i32
    %c0_i32_1 = arith.constant 0 : i32
    return %arg0, %c0_i32, %c0_i32_0 : i32, i32, i32
  }
}

</mosaic_0001>

<llo_original>
// kernel: tpu_custom_call.1
$region0: #{tpu_custom_call.1}
  #allocation0 [shape = 'u32[]', space=smem, size = 0x4, offset = 0x4, fixed_abs, tag = 'smem constant byte address 0x4 - core index']
  #allocation1 [shape = 'u32[72,128]{1,0:T(1,128)}', space=vmem, size = 0x9000, scoped, tag = 'internal scratch']
  %s0 = inlined_call_operand.hbm [shape: f32[2,8,32], index: 0, kind: input, shape index: {}]
  %s1 = inlined_call_operand.vmem [shape: f32[2,1,8], index: 1, kind: input, shape index: {}]
  %s2 = inlined_call_operand.hbm [shape: f32[1,32], index: 2, kind: input, shape index: {}]
  %s3 = inlined_call_operand.hbm [shape: f32[1,32], index: 3, kind: input, shape index: {}]
  %s4 = inlined_call_operand.vmem [shape: f32[2,32,96], index: 4, kind: input, shape index: {}]
  %s5 = inlined_call_operand.vmem [shape: f32[2,1,96], index: 5, kind: input, shape index: {}]
  %s6 = inlined_call_operand.vmem [shape: f32[2,32,32], index: 6, kind: input, shape index: {}]
  %s7 = inlined_call_operand.vmem [shape: f32[2,1,32], index: 7, kind: input, shape index: {}]
  %s8 = inlined_call_operand.hbm [shape: f32[2,1,32], index: 8, kind: input, shape index: {}]
  %s9 = inlined_call_operand.vmem [shape: f32[2,1,32], index: 9, kind: input, shape index: {}]
  %s10 = inlined_call_operand.vmem [shape: f32[2,32,64], index: 10, kind: input, shape index: {}]
  %s11 = inlined_call_operand.hbm [shape: f32[2,1,64], index: 11, kind: input, shape index: {}]
  %s12 = inlined_call_operand.vmem [shape: f32[2,64,32], index: 12, kind: input, shape index: {}]
  %s13 = inlined_call_operand.vmem [shape: f32[2,1,32], index: 13, kind: input, shape index: {}]
  %s14 = inlined_call_operand.hbm [shape: f32[2,1,32], index: 14, kind: input, shape index: {}]
  %s15 = inlined_call_operand.vmem [shape: f32[2,1,32], index: 15, kind: input, shape index: {}]
  %s16 = inlined_call_operand.vmem [shape: f32[32,32], index: 16, kind: input, shape index: {}]
  %s17 = inlined_call_operand.vmem [shape: f32[1,32], index: 17, kind: input, shape index: {}]
  %s18 = inlined_call_operand.vmem [shape: f32[32,3], index: 18, kind: input, shape index: {}]
  %s19 = inlined_call_operand.vmem [shape: f32[1,3], index: 19, kind: input, shape index: {}]
  %s20 = inlined_call_operand.hbm [shape: f32[2,1,3], index: 20, kind: output, shape index: {}]
  %s21 = sld [smem:[#allocation0]]
  $region137: #{tpu_custom_call.1} parent=0
    _
  %s23 = ssub.s32 1, %s21
  %s24 = scalar_select 0, %s23, %s21
  $region1: #{tpu_custom_call.1} parent=0
    #allocation2 [shape = 'u8[8192]{0}', space=vmem, size = 0x2000, scoped, tag = 'input window, operand 0']
    #allocation3 [shape = 's32[2]{0}', space=sflag, size = 0x8, scoped, tag = 'scoped memory for tpu_custom_call.1']
    #allocation4 [shape = 's32[2]{0}', space=sflag, size = 0x8, scoped, tag = 'scoped memory for tpu_custom_call.1']
    #allocation5 [shape = 'u8[512]{0}', space=vmem, size = 0x400, scoped, tag = 'input window, operand 2, single buffered']
    #allocation6 [shape = 's32[1]{0}', space=sflag, size = 0x4, scoped, tag = 'scoped memory for tpu_custom_call.1']
    #allocation7 [shape = 'u8[512]{0}', space=vmem, size = 0x400, scoped, tag = 'input window, operand 3, single buffered']
    #allocation8 [shape = 'u8[1024]{0}', space=vmem, size = 0x400, scoped, tag = 'input window, operand 8, single buffered']
    #allocation9 [shape = 's32[1]{0}', space=sflag, size = 0x4, scoped, tag = 'scoped memory for tpu_custom_call.1']
    #allocation10 [shape = 'u8[1024]{0}', space=vmem, size = 0x400, scoped, tag = 'input window, operand 11, single buffered']
    #allocation11 [shape = 'u8[1024]{0}', space=vmem, size = 0x400, scoped, tag = 'input window, operand 14, single buffered']
    #allocation12 [shape = 's32[1]{0}', space=sflag, size = 0x4, scoped, tag = 'scoped memory for tpu_custom_call.1']
    #allocation13 [shape = 'u8[1024]{0}', space=vmem, size = 0x400, scoped, tag = 'output window, operand 0']
    %25 = vsyncpa [#allocation3], 0
    %s26 = scalar_lea.sflag [#allocation3], 1
    %27 = vsyncpa %s26, 0
    %28 = vsyncpa [#allocation6], 0
    %29 = vsyncpa [#allocation9], 0
    %30 = vsyncpa [#allocation12], 0
    %31 = vsyncpa [#allocation4], 0
    %s32 = scalar_lea.sflag [#allocation4], 1
    %33 = vsyncpa %s32, 0
    loop: start=0, step=1, limit=4
    $region2: #{tpu_custom_call.1} parent=1 // loop_pre_header
      _
    $region3: #{tpu_custom_call.1} parent=1 // loop_header
      %s35 = sphi 0, %s39
      %p36 = scmp.ge.s32.totalorder %s35, 4
      %s45 = sphi 0, %s47
      %s48 = sphi 0, %s45
      %s49 = sphi 0, %s48
      %s65 = sphi 0, %s49
      %s71 = sphi 0, %s73
      %s74 = sphi 0, %s71
      %s75 = sphi 0, %s74
      %s91 = sphi 0, %s75
      %s95 = sphi 0, %s95
      %s97 = sphi 0, %s95
      %s98 = sphi 0, %s97
      %s112 = sphi 0, %s98
      %s116 = sphi 0, %s116
      %s118 = sphi 0, %s116
      %s119 = sphi 0, %s118
      %s133 = sphi 0, %s119
      %s137 = sphi 0, %s137
      %s139 = sphi 0, %s137
      %s140 = sphi 0, %s139
      %s154 = sphi 0, %s140
      %s158 = sphi 0, %s158
      %s160 = sphi 0, %s158
      %s161 = sphi 0, %s160
      %s175 = sphi 0, %s161
      %s179 = sphi 0, %s179
      %s181 = sphi 0, %s179
      %s182 = sphi 0, %s181
      %s196 = sphi 0, %s182
      %s200 = sphi 0, %s200
      %s202 = sphi 0, %s200
      %s203 = sphi 0, %s202
      %s217 = sphi 0, %s203
      %s221 = sphi 0, %s221
      %s223 = sphi 0, %s221
      %s224 = sphi 0, %s223
      %s238 = sphi 0, %s224
      %s242 = sphi 0, %s242
      %s244 = sphi 0, %s242
      %s245 = sphi 0, %s244
      %s259 = sphi 0, %s245
      %s263 = sphi 0, %s263
      %s265 = sphi 0, %s263
      %s266 = sphi 0, %s265
      %s280 = sphi 0, %s266
      %s284 = sphi 0, %s284
      %s286 = sphi 0, %s284
      %s287 = sphi 0, %s286
      %s301 = sphi 0, %s287
      %s305 = sphi 0, %s305
      %s307 = sphi 0, %s305
      %s308 = sphi 0, %s307
      %s322 = sphi 0, %s308
      %s326 = sphi 0, %s326
      %s328 = sphi 0, %s326
      %s329 = sphi 0, %s328
      %s343 = sphi 0, %s329
      %s347 = sphi 0, %s347
      %s349 = sphi 0, %s347
      %s350 = sphi 0, %s349
      %s364 = sphi 0, %s350
      %s368 = sphi 0, %s368
      %s370 = sphi 0, %s368
      %s371 = sphi 0, %s370
      %s385 = sphi 0, %s371
      %s389 = sphi 0, %s389
      %s391 = sphi 0, %s389
      %s392 = sphi 0, %s391
      %s406 = sphi 0, %s392
      %s410 = sphi 0, %s410
      %s412 = sphi 0, %s410
      %s413 = sphi 0, %s412
      %s427 = sphi 0, %s413
      %s431 = sphi 0, %s431
      %s433 = sphi 0, %s431
      %s434 = sphi 0, %s433
      %s448 = sphi 0, %s434
      %s452 = sphi 0, %s452
      %s454 = sphi 0, %s452
      %s455 = sphi 0, %s454
      %s469 = sphi 0, %s455
      %s475 = sphi 0, %s477
      %s478 = sphi 0, %s475
      %s479 = sphi 0, %s478
      %s495 = sphi 0, %s479
    $region4: #{tpu_custom_call.1} parent=1 // loop_header_branch
      %38 = sbr.rel (%p36) target = $region8
    $region5: #{tpu_custom_call.1} parent=1 // loop_body
      %s40 = ssub.s32 %s35, 1
      %s41 = ssub.s32 %s35, 2
      %s42 = sadd.s32 %s35, 1
      %s43 = ssub.s32 %s35, %s42
      %p44 = scmp.eq.s32.totalorder %s43, 0
      %s46 = sadd.s32 %s45, 1
      %s47 = scalar_select %p44, %s45, %s46
      %p50 = pneg %p44
      %p51 = scmp.eq.s32.totalorder %s35, 1
      %p52 = por %p50, %p51
      %p53 = scmp.ne.s32.totalorder %s45, %s48
      %p54 = scmp.eq.s32.totalorder %s35, 0
      %p55 = por %p53, %p54
      %p56 = scmp.ne.s32.totalorder %s45, %s48
      %p57 = scmp.eq.s32.totalorder %s40, 1
      %p58 = por %p56, %p57
      %p59 = scmp.ne.s32.totalorder %s48, %s49
      %p60 = scmp.eq.s32.totalorder %s40, 0
      %p61 = por %p59, %p60
      %p62 = scmp.ne.s32.totalorder %s48, %s49
      %p63 = scmp.eq.s32.totalorder %s41, 1
      %p64 = por %p62, %p63
      %p66 = scmp.ne.s32.totalorder %s49, %s65
      %p67 = scmp.eq.s32.totalorder %s41, 0
      %p68 = por %p66, %p67
      %s69 = ssub.s32 %s35, %s42
      %p70 = scmp.eq.s32.totalorder %s69, 0
      %s72 = sadd.s32 %s71, 1
      %s73 = scalar_select %p70, %s71, %s72
      %p76 = pneg %p70
      %p77 = scmp.eq.s32.totalorder %s35, 1
      %p78 = por %p76, %p77
      %p79 = scmp.ne.s32.totalorder %s71, %s74
      %p80 = scmp.eq.s32.totalorder %s35, 0
      %p81 = por %p79, %p80
      %p82 = scmp.ne.s32.totalorder %s71, %s74
      %p83 = scmp.eq.s32.totalorder %s40, 1
      %p84 = por %p82, %p83
      %p85 = scmp.ne.s32.totalorder %s74, %s75
      %p86 = scmp.eq.s32.totalorder %s40, 0
      %p87 = por %p85, %p86
      %p88 = scmp.ne.s32.totalorder %s74, %s75
      %p89 = scmp.eq.s32.totalorder %s41, 1
      %p90 = por %p88, %p89
      %p92 = scmp.ne.s32.totalorder %s75, %s91
      %p93 = scmp.eq.s32.totalorder %s41, 0
      %p94 = por %p92, %p93
      %s96 = sadd.s32 %s95, 1
      %p99 = scmp.eq.s32.totalorder %s35, 1
      %p100 = scmp.ne.s32.totalorder %s95, %s97
      %p101 = scmp.eq.s32.totalorder %s35, 0
      %p102 = por %p100, %p101
      %p103 = scmp.ne.s32.totalorder %s95, %s97
      %p104 = scmp.eq.s32.totalorder %s40, 1
      %p105 = por %p103, %p104
      %p106 = scmp.ne.s32.totalorder %s97, %s98
      %p107 = scmp.eq.s32.totalorder %s40, 0
      %p108 = por %p106, %p107
      %p109 = scmp.ne.s32.totalorder %s97, %s98
      %p110 = scmp.eq.s32.totalorder %s41, 1
      %p111 = por %p109, %p110
      %p113 = scmp.ne.s32.totalorder %s98, %s112
      %p114 = scmp.eq.s32.totalorder %s41, 0
      %p115 = por %p113, %p114
      %s117 = sadd.s32 %s116, 1
      %p120 = scmp.eq.s32.totalorder %s35, 1
      %p121 = scmp.ne.s32.totalorder %s116, %s118
      %p122 = scmp.eq.s32.totalorder %s35, 0
      %p123 = por %p121, %p122
      %p124 = scmp.ne.s32.totalorder %s116, %s118
      %p125 = scmp.eq.s32.totalorder %s40, 1
      %p126 = por %p124, %p125
      %p127 = scmp.ne.s32.totalorder %s118, %s119
      %p128 = scmp.eq.s32.totalorder %s40, 0
      %p129 = por %p127, %p128
      %p130 = scmp.ne.s32.totalorder %s118, %s119
      %p131 = scmp.eq.s32.totalorder %s41, 1
      %p132 = por %p130, %p131
      %p134 = scmp.ne.s32.totalorder %s119, %s133
      %p135 = scmp.eq.s32.totalorder %s41, 0
      %p136 = por %p134, %p135
      %s138 = sadd.s32 %s137, 1
      %p141 = scmp.eq.s32.totalorder %s35, 1
      %p142 = scmp.ne.s32.totalorder %s137, %s139
      %p143 = scmp.eq.s32.totalorder %s35, 0
      %p144 = por %p142, %p143
      %p145 = scmp.ne.s32.totalorder %s137, %s139
      %p146 = scmp.eq.s32.totalorder %s40, 1
      %p147 = por %p145, %p146
      %p148 = scmp.ne.s32.totalorder %s139, %s140
      %p149 = scmp.eq.s32.totalorder %s40, 0
      %p150 = por %p148, %p149
      %p151 = scmp.ne.s32.totalorder %s139, %s140
      %p152 = scmp.eq.s32.totalorder %s41, 1
      %p153 = por %p151, %p152
      %p155 = scmp.ne.s32.totalorder %s140, %s154
      %p156 = scmp.eq.s32.totalorder %s41, 0
      %p157 = por %p155, %p156
      %s159 = sadd.s32 %s158, 1
      %p162 = scmp.eq.s32.totalorder %s35, 1
      %p163 = scmp.ne.s32.totalorder %s158, %s160
      %p164 = scmp.eq.s32.totalorder %s35, 0
      %p165 = por %p163, %p164
      %p166 = scmp.ne.s32.totalorder %s158, %s160
      %p167 = scmp.eq.s32.totalorder %s40, 1
      %p168 = por %p166, %p167
      %p169 = scmp.ne.s32.totalorder %s160, %s161
      %p170 = scmp.eq.s32.totalorder %s40, 0
      %p171 = por %p169, %p170
      %p172 = scmp.ne.s32.totalorder %s160, %s161
      %p173 = scmp.eq.s32.totalorder %s41, 1
      %p174 = por %p172, %p173
      %p176 = scmp.ne.s32.totalorder %s161, %s175
      %p177 = scmp.eq.s32.totalorder %s41, 0
      %p178 = por %p176, %p177
      %s180 = sadd.s32 %s179, 1
      %p183 = scmp.eq.s32.totalorder %s35, 1
      %p184 = scmp.ne.s32.totalorder %s179, %s181
      %p185 = scmp.eq.s32.totalorder %s35, 0
      %p186 = por %p184, %p185
      %p187 = scmp.ne.s32.totalorder %s179, %s181
      %p188 = scmp.eq.s32.totalorder %s40, 1
      %p189 = por %p187, %p188
      %p190 = scmp.ne.s32.totalorder %s181, %s182
      %p191 = scmp.eq.s32.totalorder %s40, 0
      %p192 = por %p190, %p191
      %p193 = scmp.ne.s32.totalorder %s181, %s182
      %p194 = scmp.eq.s32.totalorder %s41, 1
      %p195 = por %p193, %p194
      %p197 = scmp.ne.s32.totalorder %s182, %s196
      %p198 = scmp.eq.s32.totalorder %s41, 0
      %p199 = por %p197, %p198
      %s201 = sadd.s32 %s200, 1
      %p204 = scmp.eq.s32.totalorder %s35, 1
      %p205 = scmp.ne.s32.totalorder %s200, %s202
      %p206 = scmp.eq.s32.totalorder %s35, 0
      %p207 = por %p205, %p206
      %p208 = scmp.ne.s32.totalorder %s200, %s202
      %p209 = scmp.eq.s32.totalorder %s40, 1
      %p210 = por %p208, %p209
      %p211 = scmp.ne.s32.totalorder %s202, %s203
      %p212 = scmp.eq.s32.totalorder %s40, 0
      %p213 = por %p211, %p212
      %p214 = scmp.ne.s32.totalorder %s202, %s203
      %p215 = scmp.eq.s32.totalorder %s41, 1
      %p216 = por %p214, %p215
      %p218 = scmp.ne.s32.totalorder %s203, %s217
      %p219 = scmp.eq.s32.totalorder %s41, 0
      %p220 = por %p218, %p219
      %s222 = sadd.s32 %s221, 1
      %p225 = scmp.eq.s32.totalorder %s35, 1
      %p226 = scmp.ne.s32.totalorder %s221, %s223
      %p227 = scmp.eq.s32.totalorder %s35, 0
      %p228 = por %p226, %p227
      %p229 = scmp.ne.s32.totalorder %s221, %s223
      %p230 = scmp.eq.s32.totalorder %s40, 1
      %p231 = por %p229, %p230
      %p232 = scmp.ne.s32.totalorder %s223, %s224
      %p233 = scmp.eq.s32.totalorder %s40, 0
      %p234 = por %p232, %p233
      %p235 = scmp.ne.s32.totalorder %s223, %s224
      %p236 = scmp.eq.s32.totalorder %s41, 1
      %p237 = por %p235, %p236
      %p239 = scmp.ne.s32.totalorder %s224, %s238
      %p240 = scmp.eq.s32.totalorder %s41, 0
      %p241 = por %p239, %p240
      %s243 = sadd.s32 %s242, 1
      %p246 = scmp.eq.s32.totalorder %s35, 1
      %p247 = scmp.ne.s32.totalorder %s242, %s244
      %p248 = scmp.eq.s32.totalorder %s35, 0
      %p249 = por %p247, %p248
      %p250 = scmp.ne.s32.totalorder %s242, %s244
      %p251 = scmp.eq.s32.totalorder %s40, 1
      %p252 = por %p250, %p251
      %p253 = scmp.ne.s32.totalorder %s244, %s245
      %p254 = scmp.eq.s32.totalorder %s40, 0
      %p255 = por %p253, %p254
      %p256 = scmp.ne.s32.totalorder %s244, %s245
      %p257 = scmp.eq.s32.totalorder %s41, 1
      %p258 = por %p256, %p257
      %p260 = scmp.ne.s32.totalorder %s245, %s259
      %p261 = scmp.eq.s32.totalorder %s41, 0
      %p262 = por %p260, %p261
      %s264 = sadd.s32 %s263, 1
      %p267 = scmp.eq.s32.totalorder %s35, 1
      %p268 = scmp.ne.s32.totalorder %s263, %s265
      %p269 = scmp.eq.s32.totalorder %s35, 0
      %p270 = por %p268, %p269
      %p271 = scmp.ne.s32.totalorder %s263, %s265
      %p272 = scmp.eq.s32.totalorder %s40, 1
      %p273 = por %p271, %p272
      %p274 = scmp.ne.s32.totalorder %s265, %s266
      %p275 = scmp.eq.s32.totalorder %s40, 0
      %p276 = por %p274, %p275
      %p277 = scmp.ne.s32.totalorder %s265, %s266
      %p278 = scmp.eq.s32.totalorder %s41, 1
      %p279 = por %p277, %p278
      %p281 = scmp.ne.s32.totalorder %s266, %s280
      %p282 = scmp.eq.s32.totalorder %s41, 0
      %p283 = por %p281, %p282
      %s285 = sadd.s32 %s284, 1
      %p288 = scmp.eq.s32.totalorder %s35, 1
      %p289 = scmp.ne.s32.totalorder %s284, %s286
      %p290 = scmp.eq.s32.totalorder %s35, 0
      %p291 = por %p289, %p290
      %p292 = scmp.ne.s32.totalorder %s284, %s286
      %p293 = scmp.eq.s32.totalorder %s40, 1
      %p294 = por %p292, %p293
      %p295 = scmp.ne.s32.totalorder %s286, %s287
      %p296 = scmp.eq.s32.totalorder %s40, 0
      %p297 = por %p295, %p296
      %p298 = scmp.ne.s32.totalorder %s286, %s287
      %p299 = scmp.eq.s32.totalorder %s41, 1
      %p300 = por %p298, %p299
      %p302 = scmp.ne.s32.totalorder %s287, %s301
      %p303 = scmp.eq.s32.totalorder %s41, 0
      %p304 = por %p302, %p303
      %s306 = sadd.s32 %s305, 1
      %p309 = scmp.eq.s32.totalorder %s35, 1
      %p310 = scmp.ne.s32.totalorder %s305, %s307
      %p311 = scmp.eq.s32.totalorder %s35, 0
      %p312 = por %p310, %p311
      %p313 = scmp.ne.s32.totalorder %s305, %s307
      %p314 = scmp.eq.s32.totalorder %s40, 1
      %p315 = por %p313, %p314
      %p316 = scmp.ne.s32.totalorder %s307, %s308
      %p317 = scmp.eq.s32.totalorder %s40, 0
      %p318 = por %p316, %p317
      %p319 = scmp.ne.s32.totalorder %s307, %s308
      %p320 = scmp.eq.s32.totalorder %s41, 1
      %p321 = por %p319, %p320
      %p323 = scmp.ne.s32.totalorder %s308, %s322
      %p324 = scmp.eq.s32.totalorder %s41, 0
      %p325 = por %p323, %p324
      %s327 = sadd.s32 %s326, 1
      %p330 = scmp.eq.s32.totalorder %s35, 1
      %p331 = scmp.ne.s32.totalorder %s326, %s328
      %p332 = scmp.eq.s32.totalorder %s35, 0
      %p333 = por %p331, %p332
      %p334 = scmp.ne.s32.totalorder %s326, %s328
      %p335 = scmp.eq.s32.totalorder %s40, 1
      %p336 = por %p334, %p335
      %p337 = scmp.ne.s32.totalorder %s328, %s329
      %p338 = scmp.eq.s32.totalorder %s40, 0
      %p339 = por %p337, %p338
      %p340 = scmp.ne.s32.totalorder %s328, %s329
      %p341 = scmp.eq.s32.totalorder %s41, 1
      %p342 = por %p340, %p341
      %p344 = scmp.ne.s32.totalorder %s329, %s343
      %p345 = scmp.eq.s32.totalorder %s41, 0
      %p346 = por %p344, %p345
      %s348 = sadd.s32 %s347, 1
      %p351 = scmp.eq.s32.totalorder %s35, 1
      %p352 = scmp.ne.s32.totalorder %s347, %s349
      %p353 = scmp.eq.s32.totalorder %s35, 0
      %p354 = por %p352, %p353
      %p355 = scmp.ne.s32.totalorder %s347, %s349
      %p356 = scmp.eq.s32.totalorder %s40, 1
      %p357 = por %p355, %p356
      %p358 = scmp.ne.s32.totalorder %s349, %s350
      %p359 = scmp.eq.s32.totalorder %s40, 0
      %p360 = por %p358, %p359
      %p361 = scmp.ne.s32.totalorder %s349, %s350
      %p362 = scmp.eq.s32.totalorder %s41, 1
      %p363 = por %p361, %p362
      %p365 = scmp.ne.s32.totalorder %s350, %s364
      %p366 = scmp.eq.s32.totalorder %s41, 0
      %p367 = por %p365, %p366
      %s369 = sadd.s32 %s368, 1
      %p372 = scmp.eq.s32.totalorder %s35, 1
      %p373 = scmp.ne.s32.totalorder %s368, %s370
      %p374 = scmp.eq.s32.totalorder %s35, 0
      %p375 = por %p373, %p374
      %p376 = scmp.ne.s32.totalorder %s368, %s370
      %p377 = scmp.eq.s32.totalorder %s40, 1
      %p378 = por %p376, %p377
      %p379 = scmp.ne.s32.totalorder %s370, %s371
      %p380 = scmp.eq.s32.totalorder %s40, 0
      %p381 = por %p379, %p380
      %p382 = scmp.ne.s32.totalorder %s370, %s371
      %p383 = scmp.eq.s32.totalorder %s41, 1
      %p384 = por %p382, %p383
      %p386 = scmp.ne.s32.totalorder %s371, %s385
      %p387 = scmp.eq.s32.totalorder %s41, 0
      %p388 = por %p386, %p387
      %s390 = sadd.s32 %s389, 1
      %p393 = scmp.eq.s32.totalorder %s35, 1
      %p394 = scmp.ne.s32.totalorder %s389, %s391
      %p395 = scmp.eq.s32.totalorder %s35, 0
      %p396 = por %p394, %p395
      %p397 = scmp.ne.s32.totalorder %s389, %s391
      %p398 = scmp.eq.s32.totalorder %s40, 1
      %p399 = por %p397, %p398
      %p400 = scmp.ne.s32.totalorder %s391, %s392
      %p401 = scmp.eq.s32.totalorder %s40, 0
      %p402 = por %p400, %p401
      %p403 = scmp.ne.s32.totalorder %s391, %s392
      %p404 = scmp.eq.s32.totalorder %s41, 1
      %p405 = por %p403, %p404
      %p407 = scmp.ne.s32.totalorder %s392, %s406
      %p408 = scmp.eq.s32.totalorder %s41, 0
      %p409 = por %p407, %p408
      %s411 = sadd.s32 %s410, 1
      %p414 = scmp.eq.s32.totalorder %s35, 1
      %p415 = scmp.ne.s32.totalorder %s410, %s412
      %p416 = scmp.eq.s32.totalorder %s35, 0
      %p417 = por %p415, %p416
      %p418 = scmp.ne.s32.totalorder %s410, %s412
      %p419 = scmp.eq.s32.totalorder %s40, 1
      %p420 = por %p418, %p419
      %p421 = scmp.ne.s32.totalorder %s412, %s413
      %p422 = scmp.eq.s32.totalorder %s40, 0
      %p423 = por %p421, %p422
      %p424 = scmp.ne.s32.totalorder %s412, %s413
      %p425 = scmp.eq.s32.totalorder %s41, 1
      %p426 = por %p424, %p425
      %p428 = scmp.ne.s32.totalorder %s413, %s427
      %p429 = scmp.eq.s32.totalorder %s41, 0
      %p430 = por %p428, %p429
      %s432 = sadd.s32 %s431, 1
      %p435 = scmp.eq.s32.totalorder %s35, 1
      %p436 = scmp.ne.s32.totalorder %s431, %s433
      %p437 = scmp.eq.s32.totalorder %s35, 0
      %p438 = por %p436, %p437
      %p439 = scmp.ne.s32.totalorder %s431, %s433
      %p440 = scmp.eq.s32.totalorder %s40, 1
      %p441 = por %p439, %p440
      %p442 = scmp.ne.s32.totalorder %s433, %s434
      %p443 = scmp.eq.s32.totalorder %s40, 0
      %p444 = por %p442, %p443
      %p445 = scmp.ne.s32.totalorder %s433, %s434
      %p446 = scmp.eq.s32.totalorder %s41, 1
      %p447 = por %p445, %p446
      %p449 = scmp.ne.s32.totalorder %s434, %s448
      %p450 = scmp.eq.s32.totalorder %s41, 0
      %p451 = por %p449, %p450
      %s453 = sadd.s32 %s452, 1
      %p456 = scmp.eq.s32.totalorder %s35, 1
      %p457 = scmp.ne.s32.totalorder %s452, %s454
      %p458 = scmp.eq.s32.totalorder %s35, 0
      %p459 = por %p457, %p458
      %p460 = scmp.ne.s32.totalorder %s452, %s454
      %p461 = scmp.eq.s32.totalorder %s40, 1
      %p462 = por %p460, %p461
      %p463 = scmp.ne.s32.totalorder %s454, %s455
      %p464 = scmp.eq.s32.totalorder %s40, 0
      %p465 = por %p463, %p464
      %p466 = scmp.ne.s32.totalorder %s454, %s455
      %p467 = scmp.eq.s32.totalorder %s41, 1
      %p468 = por %p466, %p467
      %p470 = scmp.ne.s32.totalorder %s455, %s469
      %p471 = scmp.eq.s32.totalorder %s41, 0
      %p472 = por %p470, %p471
      %s473 = ssub.s32 %s35, %s42
      %p474 = scmp.eq.s32.totalorder %s473, 0
      %s476 = sadd.s32 %s475, 1
      %s477 = scalar_select %p474, %s475, %s476
      %p480 = pneg %p474
      %p481 = scmp.eq.s32.totalorder %s35, 1
      %p482 = por %p480, %p481
      %p483 = scmp.ne.s32.totalorder %s475, %s478
      %p484 = scmp.eq.s32.totalorder %s35, 0
      %p485 = por %p483, %p484
      %p486 = scmp.ne.s32.totalorder %s475, %s478
      %p487 = scmp.eq.s32.totalorder %s40, 1
      %p488 = por %p486, %p487
      %p489 = scmp.ne.s32.totalorder %s478, %s479
      %p490 = scmp.eq.s32.totalorder %s40, 0
      %p491 = por %p489, %p490
      %p492 = scmp.ne.s32.totalorder %s478, %s479
      %p493 = scmp.eq.s32.totalorder %s41, 1
      %p494 = por %p492, %p493
      %p496 = scmp.ne.s32.totalorder %s479, %s495
      %p497 = scmp.eq.s32.totalorder %s41, 0
      %p498 = por %p496, %p497
      %p499 = scmp.le.s32.totalorder 1, %s35
      %p500 = scmp.lt.s32.totalorder %s35, 3
      %p501 = pnand %p499, %p500
      %p502 = pneg %p501
      // Predicated region
      $region9: #{tpu_custom_call.1} parent=5 // pred_check
        _
      $region10: #{tpu_custom_call.1} parent=5 // pred_check_branch
        %504 = sbr.rel (%p501) target = $region12
      $region11: #{tpu_custom_call.1} parent=5 // pred_region
        %s505 = ssub.s32 %s35, 1
        // Predicated region
        $region13: #{tpu_custom_call.1} parent=11 // pred_check
          %p506 = pneg %p108
        $region14: #{tpu_custom_call.1} parent=11 // pred_check_branch
          %508 = sbr.rel (%p506) target = $region16
        $region15: #{tpu_custom_call.1} parent=11 // pred_region
          %510 = vsyncadd [#allocation6], 0
          %s512 = sshll.u32 %s2, 4
          %s513 = int_to_ptr.hbm [resolvable:$true] %s512
          %s514 = sshll.u32 [#allocation5], 4
          %s515 = int_to_ptr.vmem [resolvable:$true] %s514
          %517 = dma.hbm_to_vmem [thread:$0]  %s513, 16, %s515, [#allocation6]
        $region16: #{tpu_custom_call.1} parent=11 // pred_fallthru
          _
        // Predicated region
        $region17: #{tpu_custom_call.1} parent=11 // pred_check
          %p518 = pneg %p129
        $region18: #{tpu_custom_call.1} parent=11 // pred_check_branch
          %520 = sbr.rel (%p518) target = $region20
        $region19: #{tpu_custom_call.1} parent=11 // pred_region
          %522 = vsyncadd [#allocation6], 0
          %s524 = sshll.u32 %s3, 4
          %s525 = int_to_ptr.hbm [resolvable:$true] %s524
          %s526 = sshll.u32 [#allocation7], 4
          %s527 = int_to_ptr.vmem [resolvable:$true] %s526
          %529 = dma.hbm_to_vmem [thread:$0]  %s525, 16, %s527, [#allocation6]
        $region20: #{tpu_custom_call.1} parent=11 // pred_fallthru
          _
        // Predicated region
        $region21: #{tpu_custom_call.1} parent=11 // pred_check
          %p530 = pneg %p150
        $region22: #{tpu_custom_call.1} parent=11 // pred_check_branch
          %532 = sbr.rel (%p530) target = $region24
        $region23: #{tpu_custom_call.1} parent=11 // pred_region
          _
        $region24: #{tpu_custom_call.1} parent=11 // pred_fallthru
          _
        // Predicated region
        $region25: #{tpu_custom_call.1} parent=11 // pred_check
          %p533 = pneg %p171
        $region26: #{tpu_custom_call.1} parent=11 // pred_check_branch
          %535 = sbr.rel (%p533) target = $region28
        $region27: #{tpu_custom_call.1} parent=11 // pred_region
          _
        $region28: #{tpu_custom_call.1} parent=11 // pred_fallthru
          _
        // Predicated region
        $region29: #{tpu_custom_call.1} parent=11 // pred_check
          %p536 = pneg %p192
        $region30: #{tpu_custom_call.1} parent=11 // pred_check_branch
          %538 = sbr.rel (%p536) target = $region32
        $region31: #{tpu_custom_call.1} parent=11 // pred_region
          _
        $region32: #{tpu_custom_call.1} parent=11 // pred_fallthru
          _
        // Predicated region
        $region33: #{tpu_custom_call.1} parent=11 // pred_check
          %p539 = pneg %p213
        $region34: #{tpu_custom_call.1} parent=11 // pred_check_branch
          %541 = sbr.rel (%p539) target = $region36
        $region35: #{tpu_custom_call.1} parent=11 // pred_region
          _
        $region36: #{tpu_custom_call.1} parent=11 // pred_fallthru
          _
        // Predicated region
        $region37: #{tpu_custom_call.1} parent=11 // pred_check
          %p542 = pneg %p234
        $region38: #{tpu_custom_call.1} parent=11 // pred_check_branch
          %544 = sbr.rel (%p542) target = $region40
        $region39: #{tpu_custom_call.1} parent=11 // pred_region
          %546 = vsyncadd [#allocation9], 0
          %s547 = sshll.u32 %s8, 4
          %s548 = int_to_ptr.hbm [resolvable:$true] %s547
          %s549 = sshll.u32 [#allocation8], 4
          %s550 = int_to_ptr.vmem [resolvable:$true] %s549
          %555 = dma.hbm_to_vmem [thread:$0]  %s548, 32, %s550, [#allocation9], 16, 16, 1
        $region40: #{tpu_custom_call.1} parent=11 // pred_fallthru
          _
        // Predicated region
        $region41: #{tpu_custom_call.1} parent=11 // pred_check
          %p556 = pneg %p255
        $region42: #{tpu_custom_call.1} parent=11 // pred_check_branch
          %558 = sbr.rel (%p556) target = $region44
        $region43: #{tpu_custom_call.1} parent=11 // pred_region
          _
        $region44: #{tpu_custom_call.1} parent=11 // pred_fallthru
          _
        // Predicated region
        $region45: #{tpu_custom_call.1} parent=11 // pred_check
          %p559 = pneg %p276
        $region46: #{tpu_custom_call.1} parent=11 // pred_check_branch
          %561 = sbr.rel (%p559) target = $region48
        $region47: #{tpu_custom_call.1} parent=11 // pred_region
          _
        $region48: #{tpu_custom_call.1} parent=11 // pred_fallthru
          _
        // Predicated region
        $region49: #{tpu_custom_call.1} parent=11 // pred_check
          %p562 = pneg %p297
        $region50: #{tpu_custom_call.1} parent=11 // pred_check_branch
          %564 = sbr.rel (%p562) target = $region52
        $region51: #{tpu_custom_call.1} parent=11 // pred_region
          %566 = vsyncadd [#allocation9], 0
          %s567 = sshll.u32 %s11, 4
          %s568 = int_to_ptr.hbm [resolvable:$true] %s567
          %s569 = sshll.u32 [#allocation10], 4
          %s570 = int_to_ptr.vmem [resolvable:$true] %s569
          %575 = dma.hbm_to_vmem [thread:$0]  %s568, 32, %s570, [#allocation9], 16, 16, 1
        $region52: #{tpu_custom_call.1} parent=11 // pred_fallthru
          _
        // Predicated region
        $region53: #{tpu_custom_call.1} parent=11 // pred_check
          %p576 = pneg %p318
        $region54: #{tpu_custom_call.1} parent=11 // pred_check_branch
          %578 = sbr.rel (%p576) target = $region56
        $region55: #{tpu_custom_call.1} parent=11 // pred_region
          _
        $region56: #{tpu_custom_call.1} parent=11 // pred_fallthru
          _
        // Predicated region
        $region57: #{tpu_custom_call.1} parent=11 // pred_check
          %p579 = pneg %p339
        $region58: #{tpu_custom_call.1} parent=11 // pred_check_branch
          %581 = sbr.rel (%p579) target = $region60
        $region59: #{tpu_custom_call.1} parent=11 // pred_region
          _
        $region60: #{tpu_custom_call.1} parent=11 // pred_fallthru
          _
        // Predicated region
        $region61: #{tpu_custom_call.1} parent=11 // pred_check
          %p582 = pneg %p360
        $region62: #{tpu_custom_call.1} parent=11 // pred_check_branch
          %584 = sbr.rel (%p582) target = $region64
        $region63: #{tpu_custom_call.1} parent=11 // pred_region
          %586 = vsyncadd [#allocation12], 0
          %s587 = sshll.u32 %s14, 4
          %s588 = int_to_ptr.hbm [resolvable:$true] %s587
          %s589 = sshll.u32 [#allocation11], 4
          %s590 = int_to_ptr.vmem [resolvable:$true] %s589
          %595 = dma.hbm_to_vmem [thread:$0]  %s588, 32, %s590, [#allocation12], 16, 16, 1
        $region64: #{tpu_custom_call.1} parent=11 // pred_fallthru
          _
        // Predicated region
        $region65: #{tpu_custom_call.1} parent=11 // pred_check
          %p596 = pneg %p381
        $region66: #{tpu_custom_call.1} parent=11 // pred_check_branch
          %598 = sbr.rel (%p596) target = $region68
        $region67: #{tpu_custom_call.1} parent=11 // pred_region
          _
        $region68: #{tpu_custom_call.1} parent=11 // pred_fallthru
          _
        // Predicated region
        $region69: #{tpu_custom_call.1} parent=11 // pred_check
          %p599 = pneg %p402
        $region70: #{tpu_custom_call.1} parent=11 // pred_check_branch
          %601 = sbr.rel (%p599) target = $region72
        $region71: #{tpu_custom_call.1} parent=11 // pred_region
          _
        $region72: #{tpu_custom_call.1} parent=11 // pred_fallthru
          _
        // Predicated region
        $region73: #{tpu_custom_call.1} parent=11 // pred_check
          %p602 = pneg %p423
        $region74: #{tpu_custom_call.1} parent=11 // pred_check_branch
          %604 = sbr.rel (%p602) target = $region76
        $region75: #{tpu_custom_call.1} parent=11 // pred_region
          _
        $region76: #{tpu_custom_call.1} parent=11 // pred_fallthru
          _
        // Predicated region
        $region77: #{tpu_custom_call.1} parent=11 // pred_check
          %p605 = pneg %p444
        $region78: #{tpu_custom_call.1} parent=11 // pred_check_branch
          %607 = sbr.rel (%p605) target = $region80
        $region79: #{tpu_custom_call.1} parent=11 // pred_region
          _
        $region80: #{tpu_custom_call.1} parent=11 // pred_fallthru
          _
        // Predicated region
        $region81: #{tpu_custom_call.1} parent=11 // pred_check
          %p608 = pneg %p465
        $region82: #{tpu_custom_call.1} parent=11 // pred_check_branch
          %610 = sbr.rel (%p608) target = $region84
        $region83: #{tpu_custom_call.1} parent=11 // pred_region
          _
        $region84: #{tpu_custom_call.1} parent=11 // pred_fallthru
          _
      $region12: #{tpu_custom_call.1} parent=5 // pred_fallthru
        _
      %p611 = scmp.lt.s32.totalorder %s35, 2
      // Predicated region
      $region85: #{tpu_custom_call.1} parent=5 // pred_check
        %p612 = pneg %p611
      $region86: #{tpu_custom_call.1} parent=5 // pred_check_branch
        %614 = sbr.rel (%p612) target = $region88
      $region87: #{tpu_custom_call.1} parent=5 // pred_region
        // Predicated region
        $region89: #{tpu_custom_call.1} parent=87 // pred_check
          %p615 = pneg %p55
        $region90: #{tpu_custom_call.1} parent=87 // pred_check_branch
          %617 = sbr.rel (%p615) target = $region92
        $region91: #{tpu_custom_call.1} parent=87 // pred_region
          %s618 = sand.u32 %s45, 1
          %s619 = scalar_lea.sflag [#allocation3], %s618
          %s620 = sand.u32 %s45, 1
          %s621 = smul.addr %s620, 8
          %s622 = scalar_lea.vmem [#allocation2], %s621
          %624 = vsyncadd %s619, 0
          %s625 = smul.addr %s35, 8
          %s626 = scalar_lea.hbm %s0, %s625
          %s628 = sshll.u32 %s626, 4
          %s629 = int_to_ptr.hbm [resolvable:$true] %s628
          %s630 = sshll.u32 %s622, 4
          %s631 = int_to_ptr.vmem [resolvable:$true] %s630
          %633 = dma.hbm_to_vmem [thread:$0]  %s629, 128, %s631, %s619
        $region92: #{tpu_custom_call.1} parent=87 // pred_fallthru
          _
        // Predicated region
        $region93: #{tpu_custom_call.1} parent=87 // pred_check
          %p634 = pneg %p81
        $region94: #{tpu_custom_call.1} parent=87 // pred_check_branch
          %636 = sbr.rel (%p634) target = $region96
        $region95: #{tpu_custom_call.1} parent=87 // pred_region
          %p637 = scmp.lt.s32.totalorder %s35, 1
          %s638 = scalar_select %p637, %s35, 1
          %s639 = scalar_lea.vmem %s1, %s638
        $region96: #{tpu_custom_call.1} parent=87 // pred_fallthru
          _
      $region88: #{tpu_custom_call.1} parent=5 // pred_fallthru
        _
      %p640 = scmp.le.s32.totalorder 1, %s35
      %p641 = scmp.lt.s32.totalorder %s35, 3
      %p642 = pnand %p640, %p641
      %p643 = pneg %p642
      // Predicated region
      $region97: #{tpu_custom_call.1} parent=5 // pred_check
        _
      $region98: #{tpu_custom_call.1} parent=5 // pred_check_branch
        %645 = sbr.rel (%p642) target = $region100
      $region99: #{tpu_custom_call.1} parent=5 // pred_region
        %s646 = ssub.s32 %s35, 1
        %s647 = sand.u32 %s48, 1
        %s648 = scalar_lea.sflag [#allocation3], %s647
        %s649 = sand.u32 %s48, 1
        %s650 = smul.addr %s649, 8
        %s651 = scalar_lea.vmem [#allocation2], %s650
        // Predicated region
        $region101: #{tpu_custom_call.1} parent=99 // pred_check
          %p652 = pneg %p61
        $region102: #{tpu_custom_call.1} parent=99 // pred_check_branch
          %654 = sbr.rel (%p652) target = $region104
        $region103: #{tpu_custom_call.1} parent=99 // pred_region
          %656 = dma.done %s648, 128
        $region104: #{tpu_custom_call.1} parent=99 // pred_fallthru
          _
        // Predicated region
        $region105: #{tpu_custom_call.1} parent=99 // pred_check
          %p657 = pneg %p108
        $region106: #{tpu_custom_call.1} parent=99 // pred_check_branch
          %659 = sbr.rel (%p657) target = $region108
        $region107: #{tpu_custom_call.1} parent=99 // pred_region
          %661 = dma.done [#allocation6], 16
        $region108: #{tpu_custom_call.1} parent=99 // pred_fallthru
          _
        // Predicated region
        $region109: #{tpu_custom_call.1} parent=99 // pred_check
          %p662 = pneg %p129
        $region110: #{tpu_custom_call.1} parent=99 // pred_check_branch
          %664 = sbr.rel (%p662) target = $region112
        $region111: #{tpu_custom_call.1} parent=99 // pred_region
          %666 = dma.done [#allocation6], 16
        $region112: #{tpu_custom_call.1} parent=99 // pred_fallthru
          _
        // Predicated region
        $region113: #{tpu_custom_call.1} parent=99 // pred_check
          %p667 = pneg %p234
        $region114: #{tpu_custom_call.1} parent=99 // pred_check_branch
          %669 = sbr.rel (%p667) target = $region116
        $region115: #{tpu_custom_call.1} parent=99 // pred_region
          %671 = dma.done [#allocation9], 32
        $region116: #{tpu_custom_call.1} parent=99 // pred_fallthru
          _
        // Predicated region
        $region117: #{tpu_custom_call.1} parent=99 // pred_check
          %p672 = pneg %p297
        $region118: #{tpu_custom_call.1} parent=99 // pred_check_branch
          %674 = sbr.rel (%p672) target = $region120
        $region119: #{tpu_custom_call.1} parent=99 // pred_region
          %676 = dma.done [#allocation9], 32
        $region120: #{tpu_custom_call.1} parent=99 // pred_fallthru
          _
        // Predicated region
        $region121: #{tpu_custom_call.1} parent=99 // pred_check
          %p677 = pneg %p360
        $region122: #{tpu_custom_call.1} parent=99 // pred_check_branch
          %679 = sbr.rel (%p677) target = $region124
        $region123: #{tpu_custom_call.1} parent=99 // pred_region
          %681 = dma.done [#allocation12], 32
        $region124: #{tpu_custom_call.1} parent=99 // pred_fallthru
          _
        %s682 = sand.u32 %s48, 1
        %s683 = scalar_lea.sflag [#allocation3], %s682
        %s684 = sand.u32 %s48, 1
        %s685 = smul.addr %s684, 8
        %s686 = scalar_lea.vmem [#allocation2], %s685
        %p687 = pneg %p61
        %p688 = pneg %p58
        %p689 = scmp.lt.s32.totalorder %s40, 1
        %s690 = scalar_select %p689, %s40, 1
        %s691 = scalar_lea.vmem %s1, %s690
        %p692 = pneg %p87
        %p693 = pneg %p84
        %p694 = pneg %p108
        %p695 = pneg %p105
        %p696 = pneg %p129
        %p697 = pneg %p126
        %p698 = pneg %p150
        %p699 = pneg %p147
        %p700 = pneg %p171
        %p701 = pneg %p168
        %p702 = pneg %p192
        %p703 = pneg %p189
        %p704 = pneg %p213
        %p705 = pneg %p210
        %p706 = pneg %p234
        %p707 = pneg %p231
        %p708 = pneg %p255
        %p709 = pneg %p252
        %p710 = pneg %p276
        %p711 = pneg %p273
        %p712 = pneg %p297
        %p713 = pneg %p294
        %p714 = pneg %p318
        %p715 = pneg %p315
        %p716 = pneg %p339
        %p717 = pneg %p336
        %p718 = pneg %p360
        %p719 = pneg %p357
        %p720 = pneg %p381
        %p721 = pneg %p378
        %p722 = pneg %p402
        %p723 = pneg %p399
        %p724 = pneg %p423
        %p725 = pneg %p420
        %p726 = pneg %p444
        %p727 = pneg %p441
        %p728 = pneg %p465
        %p729 = pneg %p462
        %p730 = pneg %p491
        %p731 = pneg %p488
        %s732 = sand.u32 %s478, 1
        %s733 = scalar_lea.sflag [#allocation4], %s732
        %s734 = sand.u32 %s478, 1
        %s735 = scalar_lea.vmem [#allocation13], %s734
        %p736 = scmp.lt.s32.totalorder %s40, 1
        %s737 = scalar_select %p736, %s40, 1
        %s738 = scalar_lea.vmem %s1, %s737
        %v739 = vld [vmem:[%s651] sm:$0xff]
        %v740 = vld [vmem:[%s738] sm:$0x1]
        %v741 = vld [vmem:[#allocation5] sm:$0x1]
        %v742 = vld [vmem:[#allocation7] sm:$0x1]
        %vm743 = vcmask 261120
        %v744 = vsel %vm743, %v739, 0.0
        %745 = vadd.xlane.f32.xlu0 %v744
        %v746 = vpop.xlane.xlu0 %745
        %v747 = vrcp.pop 32.0
        %v748 = vmul.f32 32.0, %v747
        %v749 = vsub.f32 1.0, %v748
        %v750 = vmul.f32 %v747, %v749
        %v751 = vadd.f32 %v747, %v750
        %vm752 = vweird.f32 %v747
        %v753 = vsel %vm752, %v747, %v751
        %v754 = vmul.f32 %v746, %v753
        %v755 = vsub.f32 %v739, %v754
        %v756 = vmul.f32 %v755, %v755
        %v757 = vsel %vm743, %v756, 0.0
        %758 = vadd.xlane.f32.xlu0 %v757
        %v759 = vpop.xlane.xlu0 %758
        %v760 = vmul.f32 %v759, %v753
        %v761 = vadd.f32 %v760, 1e-12
        %v762 = vrsqrt.pop %v761
        %v763 = vmul.f32 %v762, %v761
        %v764 = vmul.f32 %v763, %v762
        %v765 = vmul.f32 0.5, %v764
        %v766 = vsub.f32 1.5, %v765
        %v767 = vmul.f32 %v762, %v766
        %vm768 = vweird.f32 %v761
        %vm769 = vweird.f32 %v762
        %vm770 = vmor %vm768, %vm769
        %v771 = vsel %vm770, %v762, %v767
        %v772 = vmul.f32 %v755, %v771
        %v774 = vperm.slane %v741, 0
        %v776 = vmul.f32 %v772, %v774
        %v778 = vperm.slane %v742, 0
        %v780 = vadd.f32 %v776, %v778
        %v781 = vld [vmem:[%s4] sm:$0xff]
        %v782 = vld [vmem:[%s4 + $0x8] sm:$0xff]
        %v783 = vld [vmem:[%s4 + $0x10] sm:$0xff]
        %v784 = vld [vmem:[%s4 + $0x18] sm:$0xff]
        %v785 = vld [vmem:[%s5] sm:$0x1]
        %v787 = vperm.slane %v785, 0
        %v790 = vsel %vm743, %v780, 0
        %792 = vmatpush.msra.mxu0 0.0
        %793 = vmatpush.msra.mxu0 0.0
        %794 = vmatpush.msra.mxu0 0.0
        %795 = vmatpush.msra.mxu0 0.0
        %796 = vmatpush.msra.mxu0 0.0
        %797 = vmatpush.msra.mxu0 0.0
        %798 = vmatpush.msra.mxu0 0.0
        %799 = vmatpush.msra.mxu0 0.0
        %800 = vmatpush.msra.mxu0 0.0
        %801 = vmatpush.msra.mxu0 0.0
        %802 = vmatpush.msra.mxu0 0.0
        %803 = vmatpush.msra.mxu0 0.0
        %804 = vmatpush.msra.mxu0 %v784
        %805 = vmatpush.msra.mxu0 %v783
        %806 = vmatpush.msra.mxu0 %v782
        %807 = vmatpush.msra.mxu0 %v781
        %808 = vmatmul.f32.gmra.mxu0 %v790
        %v809 = vpop.f32.mrf.mxu0
        %v810 = vadd.f32 %v787, %v809
        %811 = vdwg.mxu0
        %v812 = vld [vmem:[%s6] sm:$0xff]
        %v813 = vld [vmem:[%s6 + $0x8] sm:$0xff]
        %v814 = vld [vmem:[%s6 + $0x10] sm:$0xff]
        %v815 = vld [vmem:[%s6 + $0x18] sm:$0xff]
        %v817 = vperm.slane %v740, 0
        %820 = vrot.lane.b32.xlu0 %v810, 96
        %v821 = vpop.permute.xlu0 %820
        %vm822 = vcmask 64512
        %v823 = vsel %vm822, %v810, 0
        %v825 = vsel %vm822, %v821, 0
        %827 = vmatpush.xpose.msra.mxu0 0.0
        %828 = vmatpush.xpose.msra.mxu0 0.0
        %829 = vmatpush.xpose.msra.mxu0 0.0
        %830 = vmatpush.xpose.msra.mxu0 0.0
        %831 = vmatpush.xpose.msra.mxu0 0.0
        %832 = vmatpush.xpose.msra.mxu0 0.0
        %833 = vmatpush.xpose.msra.mxu0 0.0
        %834 = vmatpush.xpose.msra.mxu0 0.0
        %835 = vmatpush.xpose.msra.mxu0 0.0
        %836 = vmatpush.xpose.msra.mxu0 0.0
        %837 = vmatpush.xpose.msra.mxu0 0.0
        %838 = vmatpush.xpose.msra.mxu0 0.0
        %839 = vmatpush.xpose.msra.mxu0 0.0
        %840 = vmatpush.xpose.msra.mxu0 0.0
        %841 = vmatpush.xpose.msra.mxu0 0.0
        %842 = vmatpush.xpose.msra.mxu0 %v825
        %843 = vmatmul.f32.gmra.mxu0 %v823
        %v844 = vpop.f32.mrf.mxu0
        %v845 = vadd.f32 %v817, %v844
        %846 = vdwg.mxu0
        %v847 = vsel %vm822, %v845, -inf
        %848 = vmax.xlane.f32.xlu0 %v847
        %v849 = vpop.xlane.xlu0 %848
        %v850 = vsub.f32 %v845, %v849
        %v851 = vmul.f32 %v850, 1.442695
        %v852 = vpow.pop %v851
        %v853 = vsel %vm822, %v852, 0.0
        %854 = vadd.xlane.f32.xlu0 %v853
        %v855 = vpop.xlane.xlu0 %854
        %v856 = vrcp.pop %v855
        %v857 = vmul.f32 %v852, %v856
        %858 = vrot.lane.b32.xlu0 %v810, 64
        %v859 = vpop.permute.xlu0 %858
        %v862 = vsel %vm822, %v857, 0
        %864 = vmatpush.msra.mxu0 0.0
        %865 = vmatpush.msra.mxu0 0.0
        %866 = vmatpush.msra.mxu0 0.0
        %867 = vmatpush.msra.mxu0 0.0
        %868 = vmatpush.msra.mxu0 0.0
        %869 = vmatpush.msra.mxu0 0.0
        %870 = vmatpush.msra.mxu0 0.0
        %871 = vmatpush.msra.mxu0 0.0
        %872 = vmatpush.msra.mxu0 0.0
        %873 = vmatpush.msra.mxu0 0.0
        %874 = vmatpush.msra.mxu0 0.0
        %875 = vmatpush.msra.mxu0 0.0
        %876 = vmatpush.msra.mxu0 0.0
        %877 = vmatpush.msra.mxu0 0.0
        %878 = vmatpush.msra.mxu0 0.0
        %879 = vmatpush.msra.mxu0 %v859
        %880 = vmatmul.f32.gmra.mxu0 %v862
        %v881 = vpop.f32.mrf.mxu0
        %v882 = vadd.f32 0.0, %v881
        %883 = vdwg.mxu0
        %884 = vrot.lane.b32.xlu0 %v810, 120
        %v885 = vpop.permute.xlu0 %884
        %886 = vrot.lane.b32.xlu0 %v810, 88
        %v887 = vpop.permute.xlu0 %886
        %v888 = vsel %vm822, %v885, 0
        %v890 = vsel %vm822, %v887, 0
        %892 = vmatpush.xpose.msra.mxu0 0.0
        %893 = vmatpush.xpose.msra.mxu0 0.0
        %894 = vmatpush.xpose.msra.mxu0 0.0
        %895 = vmatpush.xpose.msra.mxu0 0.0
        %896 = vmatpush.xpose.msra.mxu0 0.0
        %897 = vmatpush.xpose.msra.mxu0 0.0
        %898 = vmatpush.xpose.msra.mxu0 0.0
        %899 = vmatpush.xpose.msra.mxu0 0.0
        %900 = vmatpush.xpose.msra.mxu0 0.0
        %901 = vmatpush.xpose.msra.mxu0 0.0
        %902 = vmatpush.xpose.msra.mxu0 0.0
        %903 = vmatpush.xpose.msra.mxu0 0.0
        %904 = vmatpush.xpose.msra.mxu0 0.0
        %905 = vmatpush.xpose.msra.mxu0 0.0
        %906 = vmatpush.xpose.msra.mxu0 0.0
        %907 = vmatpush.xpose.msra.mxu0 %v890
        %908 = vmatmul.f32.gmra.mxu0 %v888
        %v909 = vpop.f32.mrf.mxu0
        %v910 = vadd.f32 %v817, %v909
        %911 = vdwg.mxu0
        %v912 = vsel %vm822, %v910, -inf
        %913 = vmax.xlane.f32.xlu0 %v912
        %v914 = vpop.xlane.xlu0 %913
        %v915 = vsub.f32 %v910, %v914
        %v916 = vmul.f32 %v915, 1.442695
        %v917 = vpow.pop %v916
        %v918 = vsel %vm822, %v917, 0.0
        %919 = vadd.xlane.f32.xlu0 %v918
        %v920 = vpop.xlane.xlu0 %919
        %v921 = vrcp.pop %v920
        %v922 = vmul.f32 %v917, %v921
        %923 = vrot.lane.b32.xlu0 %v810, 56
        %v924 = vpop.permute.xlu0 %923
        %v927 = vsel %vm822, %v922, 0
        %929 = vmatpush.msra.mxu0 0.0
        %930 = vmatpush.msra.mxu0 0.0
        %931 = vmatpush.msra.mxu0 0.0
        %932 = vmatpush.msra.mxu0 0.0
        %933 = vmatpush.msra.mxu0 0.0
        %934 = vmatpush.msra.mxu0 0.0
        %935 = vmatpush.msra.mxu0 0.0
        %936 = vmatpush.msra.mxu0 0.0
        %937 = vmatpush.msra.mxu0 0.0
        %938 = vmatpush.msra.mxu0 0.0
        %939 = vmatpush.msra.mxu0 0.0
        %940 = vmatpush.msra.mxu0 0.0
        %941 = vmatpush.msra.mxu0 0.0
        %942 = vmatpush.msra.mxu0 0.0
        %943 = vmatpush.msra.mxu0 0.0
        %944 = vmatpush.msra.mxu0 %v924
        %945 = vmatmul.f32.gmra.mxu0 %v927
        %v946 = vpop.f32.mrf.mxu0
        %v947 = vadd.f32 0.0, %v946
        %948 = vdwg.mxu0
        %v950 = vsel %vm822, %v947, 0
        %952 = vmatpush.msra.mxu0 0.0
        %953 = vmatpush.msra.mxu0 0.0
        %954 = vmatpush.msra.mxu0 0.0
        %955 = vmatpush.msra.mxu0 0.0
        %956 = vmatpush.msra.mxu0 0.0
        %957 = vmatpush.msra.mxu0 0.0
        %958 = vmatpush.msra.mxu0 0.0
        %959 = vmatpush.msra.mxu0 0.0
        %960 = vmatpush.msra.mxu0 0.0
        %961 = vmatpush.msra.mxu0 0.0
        %962 = vmatpush.msra.mxu0 0.0
        %963 = vmatpush.msra.mxu0 0.0
        %964 = vmatpush.msra.mxu0 0.0
        %965 = vmatpush.msra.mxu0 0.0
        %966 = vmatpush.msra.mxu0 0.0
        %967 = vmatpush.msra.mxu0 %v813
        %968 = vmatmul.f32.gmra.mxu0 %v950
        %v969 = vpop.f32.mrf.mxu0
        %v970 = vadd.f32 0.0, %v969
        %971 = vdwg.mxu0
        %972 = vrot.lane.b32.xlu0 %v810, 112
        %v973 = vpop.permute.xlu0 %972
        %974 = vrot.lane.b32.xlu0 %v810, 80
        %v975 = vpop.permute.xlu0 %974
        %v976 = vsel %vm822, %v973, 0
        %v978 = vsel %vm822, %v975, 0
        %980 = vmatpush.xpose.msra.mxu0 0.0
        %981 = vmatpush.xpose.msra.mxu0 0.0
        %982 = vmatpush.xpose.msra.mxu0 0.0
        %983 = vmatpush.xpose.msra.mxu0 0.0
        %984 = vmatpush.xpose.msra.mxu0 0.0
        %985 = vmatpush.xpose.msra.mxu0 0.0
        %986 = vmatpush.xpose.msra.mxu0 0.0
        %987 = vmatpush.xpose.msra.mxu0 0.0
        %988 = vmatpush.xpose.msra.mxu0 0.0
        %989 = vmatpush.xpose.msra.mxu0 0.0
        %990 = vmatpush.xpose.msra.mxu0 0.0
        %991 = vmatpush.xpose.msra.mxu0 0.0
        %992 = vmatpush.xpose.msra.mxu0 0.0
        %993 = vmatpush.xpose.msra.mxu0 0.0
        %994 = vmatpush.xpose.msra.mxu0 0.0
        %995 = vmatpush.xpose.msra.mxu0 %v978
        %996 = vmatmul.f32.gmra.mxu0 %v976
        %v997 = vpop.f32.mrf.mxu0
        %v998 = vadd.f32 %v817, %v997
        %999 = vdwg.mxu0
        %v1000 = vsel %vm822, %v998, -inf
        %1001 = vmax.xlane.f32.xlu0 %v1000
        %v1002 = vpop.xlane.xlu0 %1001
        %v1003 = vsub.f32 %v998, %v1002
        %v1004 = vmul.f32 %v1003, 1.442695
        %v1005 = vpow.pop %v1004
        %v1006 = vsel %vm822, %v1005, 0.0
        %1007 = vadd.xlane.f32.xlu0 %v1006
        %v1008 = vpop.xlane.xlu0 %1007
        %v1009 = vrcp.pop %v1008
        %v1010 = vmul.f32 %v1005, %v1009
        %1011 = vrot.lane.b32.xlu0 %v810, 48
        %v1012 = vpop.permute.xlu0 %1011
        %v1015 = vsel %vm822, %v1010, 0
        %1017 = vmatpush.msra.mxu0 0.0
        %1018 = vmatpush.msra.mxu0 0.0
        %1019 = vmatpush.msra.mxu0 0.0
        %1020 = vmatpush.msra.mxu0 0.0
        %1021 = vmatpush.msra.mxu0 0.0
        %1022 = vmatpush.msra.mxu0 0.0
        %1023 = vmatpush.msra.mxu0 0.0
        %1024 = vmatpush.msra.mxu0 0.0
        %1025 = vmatpush.msra.mxu0 0.0
        %1026 = vmatpush.msra.mxu0 0.0
        %1027 = vmatpush.msra.mxu0 0.0
        %1028 = vmatpush.msra.mxu0 0.0
        %1029 = vmatpush.msra.mxu0 0.0
        %1030 = vmatpush.msra.mxu0 0.0
        %1031 = vmatpush.msra.mxu0 0.0
        %1032 = vmatpush.msra.mxu0 %v1012
        %1033 = vmatmul.f32.gmra.mxu0 %v1015
        %v1034 = vpop.f32.mrf.mxu0
        %v1035 = vadd.f32 0.0, %v1034
        %1036 = vdwg.mxu0
        %v1038 = vsel %vm822, %v1035, 0
        %1040 = vmatpush.msra.mxu0 0.0
        %1041 = vmatpush.msra.mxu0 0.0
        %1042 = vmatpush.msra.mxu0 0.0
        %1043 = vmatpush.msra.mxu0 0.0
        %1044 = vmatpush.msra.mxu0 0.0
        %1045 = vmatpush.msra.mxu0 0.0
        %1046 = vmatpush.msra.mxu0 0.0
        %1047 = vmatpush.msra.mxu0 0.0
        %1048 = vmatpush.msra.mxu0 0.0
        %1049 = vmatpush.msra.mxu0 0.0
        %1050 = vmatpush.msra.mxu0 0.0
        %1051 = vmatpush.msra.mxu0 0.0
        %1052 = vmatpush.msra.mxu0 0.0
        %1053 = vmatpush.msra.mxu0 0.0
        %1054 = vmatpush.msra.mxu0 0.0
        %1055 = vmatpush.msra.mxu0 %v814
        %1056 = vmatmul.f32.gmra.mxu0 %v1038
        %v1057 = vpop.f32.mrf.mxu0
        %v1058 = vadd.f32 0.0, %v1057
        %1059 = vdwg.mxu0
        %1060 = vrot.lane.b32.xlu0 %v810, 104
        %v1061 = vpop.permute.xlu0 %1060
        %1062 = vrot.lane.b32.xlu0 %v810, 72
        %v1063 = vpop.permute.xlu0 %1062
        %v1064 = vsel %vm822, %v1061, 0
        %v1066 = vsel %vm822, %v1063, 0
        %1068 = vmatpush.xpose.msra.mxu0 0.0
        %1069 = vmatpush.xpose.msra.mxu0 0.0
        %1070 = vmatpush.xpose.msra.mxu0 0.0
        %1071 = vmatpush.xpose.msra.mxu0 0.0
        %1072 = vmatpush.xpose.msra.mxu0 0.0
        %1073 = vmatpush.xpose.msra.mxu0 0.0
        %1074 = vmatpush.xpose.msra.mxu0 0.0
        %1075 = vmatpush.xpose.msra.mxu0 0.0
        %1076 = vmatpush.xpose.msra.mxu0 0.0
        %1077 = vmatpush.xpose.msra.mxu0 0.0
        %1078 = vmatpush.xpose.msra.mxu0 0.0
        %1079 = vmatpush.xpose.msra.mxu0 0.0
        %1080 = vmatpush.xpose.msra.mxu0 0.0
        %1081 = vmatpush.xpose.msra.mxu0 0.0
        %1082 = vmatpush.xpose.msra.mxu0 0.0
        %1083 = vmatpush.xpose.msra.mxu0 %v1066
        %1084 = vmatmul.f32.gmra.mxu0 %v1064
        %v1085 = vpop.f32.mrf.mxu0
        %v1086 = vadd.f32 %v817, %v1085
        %1087 = vdwg.mxu0
        %v1088 = vsel %vm822, %v1086, -inf
        %1089 = vmax.xlane.f32.xlu0 %v1088
        %v1090 = vpop.xlane.xlu0 %1089
        %v1091 = vsub.f32 %v1086, %v1090
        %v1092 = vmul.f32 %v1091, 1.442695
        %v1093 = vpow.pop %v1092
        %v1094 = vsel %vm822, %v1093, 0.0
        %1095 = vadd.xlane.f32.xlu0 %v1094
        %v1096 = vpop.xlane.xlu0 %1095
        %v1097 = vrcp.pop %v1096
        %v1098 = vmul.f32 %v1093, %v1097
        %1099 = vrot.lane.b32.xlu0 %v810, 40
        %v1100 = vpop.permute.xlu0 %1099
        %v1103 = vsel %vm822, %v1098, 0
        %1105 = vmatpush.msra.mxu0 0.0
        %1106 = vmatpush.msra.mxu0 0.0
        %1107 = vmatpush.msra.mxu0 0.0
        %1108 = vmatpush.msra.mxu0 0.0
        %1109 = vmatpush.msra.mxu0 0.0
        %1110 = vmatpush.msra.mxu0 0.0
        %1111 = vmatpush.msra.mxu0 0.0
        %1112 = vmatpush.msra.mxu0 0.0
        %1113 = vmatpush.msra.mxu0 0.0
        %1114 = vmatpush.msra.mxu0 0.0
        %1115 = vmatpush.msra.mxu0 0.0
        %1116 = vmatpush.msra.mxu0 0.0
        %1117 = vmatpush.msra.mxu0 0.0
        %1118 = vmatpush.msra.mxu0 0.0
        %1119 = vmatpush.msra.mxu0 0.0
        %1120 = vmatpush.msra.mxu0 %v1100
        %1121 = vmatmul.f32.gmra.mxu0 %v1103
        %v1122 = vpop.f32.mrf.mxu0
        %v1123 = vadd.f32 0.0, %v1122
        %1124 = vdwg.mxu0
        %v1126 = vsel %vm822, %v1123, 0
        %1128 = vmatpush.msra.mxu0 0.0
        %1129 = vmatpush.msra.mxu0 0.0
        %1130 = vmatpush.msra.mxu0 0.0
        %1131 = vmatpush.msra.mxu0 0.0
        %1132 = vmatpush.msra.mxu0 0.0
        %1133 = vmatpush.msra.mxu0 0.0
        %1134 = vmatpush.msra.mxu0 0.0
        %1135 = vmatpush.msra.mxu0 0.0
        %1136 = vmatpush.msra.mxu0 0.0
        %1137 = vmatpush.msra.mxu0 0.0
        %1138 = vmatpush.msra.mxu0 0.0
        %1139 = vmatpush.msra.mxu0 0.0
        %1140 = vmatpush.msra.mxu0 0.0
        %1141 = vmatpush.msra.mxu0 0.0
        %1142 = vmatpush.msra.mxu0 0.0
        %1143 = vmatpush.msra.mxu0 %v815
        %1144 = vmatmul.f32.gmra.mxu0 %v1126
        %v1145 = vpop.f32.mrf.mxu0
        %v1146 = vadd.f32 0.0, %v1145
        %1147 = vdwg.mxu0
        %v1149 = vsel %vm822, %v882, 0
        %1151 = vmatpush.msra.mxu0 0.0
        %1152 = vmatpush.msra.mxu0 0.0
        %1153 = vmatpush.msra.mxu0 0.0
        %1154 = vmatpush.msra.mxu0 0.0
        %1155 = vmatpush.msra.mxu0 0.0
        %1156 = vmatpush.msra.mxu0 0.0
        %1157 = vmatpush.msra.mxu0 0.0
        %1158 = vmatpush.msra.mxu0 0.0
        %1159 = vmatpush.msra.mxu0 0.0
        %1160 = vmatpush.msra.mxu0 0.0
        %1161 = vmatpush.msra.mxu0 0.0
        %1162 = vmatpush.msra.mxu0 0.0
        %1163 = vmatpush.msra.mxu0 0.0
        %1164 = vmatpush.msra.mxu0 0.0
        %1165 = vmatpush.msra.mxu0 0.0
        %1166 = vmatpush.msra.mxu0 %v812
        %1167 = vmatmul.f32.gmra.mxu0 %v1149
        %v1168 = vpop.f32.mrf.mxu0
        %v1169 = vadd.f32 %v970, %v1168
        %1170 = vdwg.mxu0
        %v1171 = vadd.f32 %v1169, %v1058
        %v1172 = vadd.f32 %v1171, %v1146
        %v1173 = vld [vmem:[%s7] sm:$0x1]
        %v1175 = vperm.slane %v1173, 0
        %v1177 = vadd.f32 %v1172, %v1175
        %v1178 = vadd.f32 %v1177, %v780
        %v1179 = vld [vmem:[#allocation8] sm:$0x1]
        %v1180 = vld [vmem:[%s9] sm:$0x1]
        %v1181 = vsel %vm743, %v1178, 0.0
        %1182 = vadd.xlane.f32.xlu0 %v1181
        %v1183 = vpop.xlane.xlu0 %1182
        %v1184 = vmul.f32 %v1183, %v753
        %v1185 = vsub.f32 %v1178, %v1184
        %v1186 = vmul.f32 %v1185, %v1185
        %v1187 = vsel %vm743, %v1186, 0.0
        %1188 = vadd.xlane.f32.xlu0 %v1187
        %v1189 = vpop.xlane.xlu0 %1188
        %v1190 = vmul.f32 %v1189, %v753
        %v1191 = vadd.f32 %v1190, 1e-12
        %v1192 = vrsqrt.pop %v1191
        %v1193 = vmul.f32 %v1192, %v1191
        %v1194 = vmul.f32 %v1193, %v1192
        %v1195 = vmul.f32 0.5, %v1194
        %v1196 = vsub.f32 1.5, %v1195
        %v1197 = vmul.f32 %v1192, %v1196
        %vm1198 = vweird.f32 %v1191
        %vm1199 = vweird.f32 %v1192
        %vm1200 = vmor %vm1198, %vm1199
        %v1201 = vsel %vm1200, %v1192, %v1197
        %v1202 = vmul.f32 %v1185, %v1201
        %v1204 = vperm.slane %v1179, 0
        %v1206 = vmul.f32 %v1202, %v1204
        %v1208 = vperm.slane %v1180, 0
        %v1210 = vadd.f32 %v1206, %v1208
        %v1211 = vld [vmem:[%s10] sm:$0xff]
        %v1212 = vld [vmem:[%s10 + $0x8] sm:$0xff]
        %v1213 = vld [vmem:[%s10 + $0x10] sm:$0xff]
        %v1214 = vld [vmem:[%s10 + $0x18] sm:$0xff]
        %v1215 = vld [vmem:[#allocation10] sm:$0x1]
        %v1217 = vperm.slane %v1215, 0
        %v1220 = vsel %vm743, %v1210, 0
        %1222 = vmatpush.msra.mxu0 0.0
        %1223 = vmatpush.msra.mxu0 0.0
        %1224 = vmatpush.msra.mxu0 0.0
        %1225 = vmatpush.msra.mxu0 0.0
        %1226 = vmatpush.msra.mxu0 0.0
        %1227 = vmatpush.msra.mxu0 0.0
        %1228 = vmatpush.msra.mxu0 0.0
        %1229 = vmatpush.msra.mxu0 0.0
        %1230 = vmatpush.msra.mxu0 0.0
        %1231 = vmatpush.msra.mxu0 0.0
        %1232 = vmatpush.msra.mxu0 0.0
        %1233 = vmatpush.msra.mxu0 0.0
        %1234 = vmatpush.msra.mxu0 %v1214
        %1235 = vmatpush.msra.mxu0 %v1213
        %1236 = vmatpush.msra.mxu0 %v1212
        %1237 = vmatpush.msra.mxu0 %v1211
        %1238 = vmatmul.f32.gmra.mxu0 %v1220
        %v1239 = vpop.f32.mrf.mxu0
        %v1240 = vadd.f32 %v1217, %v1239
        %1241 = vdwg.mxu0
        %v1242 = vmul.f32 %v1240, %v1240
        %v1243 = vmul.f32 %v1240, %v1242
        %v1244 = vmul.f32 %v1243, 0.044715
        %v1245 = vadd.f32 %v1240, %v1244
        %v1246 = vmul.f32 %v1245, 0.7978846
        %v1247 = vtanh.pop %v1246
        %v1248 = vadd.f32 %v1247, 1.0
        %v1249 = vmul.f32 %v1248, 0.5
        %v1250 = vmul.f32 %v1240, %v1249
        %v1251 = vld [vmem:[%s12] sm:$0xff]
        %v1252 = vld [vmem:[%s12 + $0x8] sm:$0xff]
        %v1253 = vld [vmem:[%s12 + $0x10] sm:$0xff]
        %v1254 = vld [vmem:[%s12 + $0x18] sm:$0xff]
        %v1255 = vld [vmem:[%s12 + $0x20] sm:$0xff]
        %v1256 = vld [vmem:[%s12 + $0x28] sm:$0xff]
        %v1257 = vld [vmem:[%s12 + $0x30] sm:$0xff]
        %v1258 = vld [vmem:[%s12 + $0x38] sm:$0xff]
        %v1259 = vld [vmem:[%s13] sm:$0x1]
        %v1261 = vperm.slane %v1259, 0
        %vm1263 = vcmask 523264
        %v1265 = vsel %vm1263, %v1250, 0
        %1267 = vmatpush.msra.mxu0 0.0
        %1268 = vmatpush.msra.mxu0 0.0
        %1269 = vmatpush.msra.mxu0 0.0
        %1270 = vmatpush.msra.mxu0 0.0
        %1271 = vmatpush.msra.mxu0 0.0
        %1272 = vmatpush.msra.mxu0 0.0
        %1273 = vmatpush.msra.mxu0 0.0
        %1274 = vmatpush.msra.mxu0 0.0
        %1275 = vmatpush.msra.mxu0 %v1258
        %1276 = vmatpush.msra.mxu0 %v1257
        %1277 = vmatpush.msra.mxu0 %v1256
        %1278 = vmatpush.msra.mxu0 %v1255
        %1279 = vmatpush.msra.mxu0 %v1254
        %1280 = vmatpush.msra.mxu0 %v1253
        %1281 = vmatpush.msra.mxu0 %v1252
        %1282 = vmatpush.msra.mxu0 %v1251
        %1283 = vmatmul.f32.gmra.mxu0 %v1265
        %v1284 = vpop.f32.mrf.mxu0
        %v1285 = vadd.f32 %v1261, %v1284
        %1286 = vdwg.mxu0
        %v1287 = vadd.f32 %v1285, %v1210
        %v1288 = vld [vmem:[#allocation11] sm:$0x1]
        %v1289 = vld [vmem:[%s15] sm:$0x1]
        %v1290 = vsel %vm743, %v1287, 0.0
        %1291 = vadd.xlane.f32.xlu0 %v1290
        %v1292 = vpop.xlane.xlu0 %1291
        %v1293 = vmul.f32 %v1292, %v753
        %v1294 = vsub.f32 %v1287, %v1293
        %v1295 = vmul.f32 %v1294, %v1294
        %v1296 = vsel %vm743, %v1295, 0.0
        %1297 = vadd.xlane.f32.xlu0 %v1296
        %v1298 = vpop.xlane.xlu0 %1297
        %v1299 = vmul.f32 %v1298, %v753
        %v1300 = vadd.f32 %v1299, 1e-12
        %v1301 = vrsqrt.pop %v1300
        %v1302 = vmul.f32 %v1301, %v1300
        %v1303 = vmul.f32 %v1302, %v1301
        %v1304 = vmul.f32 0.5, %v1303
        %v1305 = vsub.f32 1.5, %v1304
        %v1306 = vmul.f32 %v1301, %v1305
        %vm1307 = vweird.f32 %v1300
        %vm1308 = vweird.f32 %v1301
        %vm1309 = vmor %vm1307, %vm1308
        %v1310 = vsel %vm1309, %v1301, %v1306
        %v1311 = vmul.f32 %v1294, %v1310
        %v1313 = vperm.slane %v1288, 0
        %v1315 = vmul.f32 %v1311, %v1313
        %v1317 = vperm.slane %v1289, 0
        %v1319 = vadd.f32 %v1315, %v1317
        %s1320 = scalar_lea.vmem %s4, 32
        %v1321 = vld [vmem:[%s1320] sm:$0xff]
        %v1322 = vld [vmem:[%s1320 + $0x8] sm:$0xff]
        %v1323 = vld [vmem:[%s1320 + $0x10] sm:$0xff]
        %v1324 = vld [vmem:[%s1320 + $0x18] sm:$0xff]
        %s1325 = scalar_lea.vmem %s5, 1
        %v1326 = vld [vmem:[%s1325] sm:$0x1]
        %v1328 = vperm.slane %v1326, 0
        %v1331 = vsel %vm743, %v1319, 0
        %1333 = vmatpush.msra.mxu0 0.0
        %1334 = vmatpush.msra.mxu0 0.0
        %1335 = vmatpush.msra.mxu0 0.0
        %1336 = vmatpush.msra.mxu0 0.0
        %1337 = vmatpush.msra.mxu0 0.0
        %1338 = vmatpush.msra.mxu0 0.0
        %1339 = vmatpush.msra.mxu0 0.0
        %1340 = vmatpush.msra.mxu0 0.0
        %1341 = vmatpush.msra.mxu0 0.0
        %1342 = vmatpush.msra.mxu0 0.0
        %1343 = vmatpush.msra.mxu0 0.0
        %1344 = vmatpush.msra.mxu0 0.0
        %1345 = vmatpush.msra.mxu0 %v1324
        %1346 = vmatpush.msra.mxu0 %v1323
        %1347 = vmatpush.msra.mxu0 %v1322
        %1348 = vmatpush.msra.mxu0 %v1321
        %1349 = vmatmul.f32.gmra.mxu0 %v1331
        %v1350 = vpop.f32.mrf.mxu0
        %v1351 = vadd.f32 %v1328, %v1350
        %1352 = vdwg.mxu0
        %s1353 = scalar_lea.vmem %s6, 32
        %v1354 = vld [vmem:[%s1353] sm:$0xff]
        %v1355 = vld [vmem:[%s1353 + $0x8] sm:$0xff]
        %v1356 = vld [vmem:[%s1353 + $0x10] sm:$0xff]
        %v1357 = vld [vmem:[%s1353 + $0x18] sm:$0xff]
        %1359 = vrot.lane.b32.xlu0 %v1351, 96
        %v1360 = vpop.permute.xlu0 %1359
        %v1361 = vsel %vm822, %v1351, 0
        %v1363 = vsel %vm822, %v1360, 0
        %1365 = vmatpush.xpose.msra.mxu0 0.0
        %1366 = vmatpush.xpose.msra.mxu0 0.0
        %1367 = vmatpush.xpose.msra.mxu0 0.0
        %1368 = vmatpush.xpose.msra.mxu0 0.0
        %1369 = vmatpush.xpose.msra.mxu0 0.0
        %1370 = vmatpush.xpose.msra.mxu0 0.0
        %1371 = vmatpush.xpose.msra.mxu0 0.0
        %1372 = vmatpush.xpose.msra.mxu0 0.0
        %1373 = vmatpush.xpose.msra.mxu0 0.0
        %1374 = vmatpush.xpose.msra.mxu0 0.0
        %1375 = vmatpush.xpose.msra.mxu0 0.0
        %1376 = vmatpush.xpose.msra.mxu0 0.0
        %1377 = vmatpush.xpose.msra.mxu0 0.0
        %1378 = vmatpush.xpose.msra.mxu0 0.0
        %1379 = vmatpush.xpose.msra.mxu0 0.0
        %1380 = vmatpush.xpose.msra.mxu0 %v1363
        %1381 = vmatmul.f32.gmra.mxu0 %v1361
        %v1382 = vpop.f32.mrf.mxu0
        %v1383 = vadd.f32 %v817, %v1382
        %1384 = vdwg.mxu0
        %v1385 = vsel %vm822, %v1383, -inf
        %1386 = vmax.xlane.f32.xlu0 %v1385
        %v1387 = vpop.xlane.xlu0 %1386
        %v1388 = vsub.f32 %v1383, %v1387
        %v1389 = vmul.f32 %v1388, 1.442695
        %v1390 = vpow.pop %v1389
        %v1391 = vsel %vm822, %v1390, 0.0
        %1392 = vadd.xlane.f32.xlu0 %v1391
        %v1393 = vpop.xlane.xlu0 %1392
        %v1394 = vrcp.pop %v1393
        %v1395 = vmul.f32 %v1390, %v1394
        %1396 = vrot.lane.b32.xlu0 %v1351, 64
        %v1397 = vpop.permute.xlu0 %1396
        %v1400 = vsel %vm822, %v1395, 0
        %1402 = vmatpush.msra.mxu0 0.0
        %1403 = vmatpush.msra.mxu0 0.0
        %1404 = vmatpush.msra.mxu0 0.0
        %1405 = vmatpush.msra.mxu0 0.0
        %1406 = vmatpush.msra.mxu0 0.0
        %1407 = vmatpush.msra.mxu0 0.0
        %1408 = vmatpush.msra.mxu0 0.0
        %1409 = vmatpush.msra.mxu0 0.0
        %1410 = vmatpush.msra.mxu0 0.0
        %1411 = vmatpush.msra.mxu0 0.0
        %1412 = vmatpush.msra.mxu0 0.0
        %1413 = vmatpush.msra.mxu0 0.0
        %1414 = vmatpush.msra.mxu0 0.0
        %1415 = vmatpush.msra.mxu0 0.0
        %1416 = vmatpush.msra.mxu0 0.0
        %1417 = vmatpush.msra.mxu0 %v1397
        %1418 = vmatmul.f32.gmra.mxu0 %v1400
        %v1419 = vpop.f32.mrf.mxu0
        %v1420 = vadd.f32 0.0, %v1419
        %1421 = vdwg.mxu0
        %1422 = vrot.lane.b32.xlu0 %v1351, 120
        %v1423 = vpop.permute.xlu0 %1422
        %1424 = vrot.lane.b32.xlu0 %v1351, 88
        %v1425 = vpop.permute.xlu0 %1424
        %v1426 = vsel %vm822, %v1423, 0
        %v1428 = vsel %vm822, %v1425, 0
        %1430 = vmatpush.xpose.msra.mxu0 0.0
        %1431 = vmatpush.xpose.msra.mxu0 0.0
        %1432 = vmatpush.xpose.msra.mxu0 0.0
        %1433 = vmatpush.xpose.msra.mxu0 0.0
        %1434 = vmatpush.xpose.msra.mxu0 0.0
        %1435 = vmatpush.xpose.msra.mxu0 0.0
        %1436 = vmatpush.xpose.msra.mxu0 0.0
        %1437 = vmatpush.xpose.msra.mxu0 0.0
        %1438 = vmatpush.xpose.msra.mxu0 0.0
        %1439 = vmatpush.xpose.msra.mxu0 0.0
        %1440 = vmatpush.xpose.msra.mxu0 0.0
        %1441 = vmatpush.xpose.msra.mxu0 0.0
        %1442 = vmatpush.xpose.msra.mxu0 0.0
        %1443 = vmatpush.xpose.msra.mxu0 0.0
        %1444 = vmatpush.xpose.msra.mxu0 0.0
        %1445 = vmatpush.xpose.msra.mxu0 %v1428
        %1446 = vmatmul.f32.gmra.mxu0 %v1426
        %v1447 = vpop.f32.mrf.mxu0
        %v1448 = vadd.f32 %v817, %v1447
        %1449 = vdwg.mxu0
        %v1450 = vsel %vm822, %v1448, -inf
        %1451 = vmax.xlane.f32.xlu0 %v1450
        %v1452 = vpop.xlane.xlu0 %1451
        %v1453 = vsub.f32 %v1448, %v1452
        %v1454 = vmul.f32 %v1453, 1.442695
        %v1455 = vpow.pop %v1454
        %v1456 = vsel %vm822, %v1455, 0.0
        %1457 = vadd.xlane.f32.xlu0 %v1456
        %v1458 = vpop.xlane.xlu0 %1457
        %v1459 = vrcp.pop %v1458
        %v1460 = vmul.f32 %v1455, %v1459
        %1461 = vrot.lane.b32.xlu0 %v1351, 56
        %v1462 = vpop.permute.xlu0 %1461
        %v1465 = vsel %vm822, %v1460, 0
        %1467 = vmatpush.msra.mxu0 0.0
        %1468 = vmatpush.msra.mxu0 0.0
        %1469 = vmatpush.msra.mxu0 0.0
        %1470 = vmatpush.msra.mxu0 0.0
        %1471 = vmatpush.msra.mxu0 0.0
        %1472 = vmatpush.msra.mxu0 0.0
        %1473 = vmatpush.msra.mxu0 0.0
        %1474 = vmatpush.msra.mxu0 0.0
        %1475 = vmatpush.msra.mxu0 0.0
        %1476 = vmatpush.msra.mxu0 0.0
        %1477 = vmatpush.msra.mxu0 0.0
        %1478 = vmatpush.msra.mxu0 0.0
        %1479 = vmatpush.msra.mxu0 0.0
        %1480 = vmatpush.msra.mxu0 0.0
        %1481 = vmatpush.msra.mxu0 0.0
        %1482 = vmatpush.msra.mxu0 %v1462
        %1483 = vmatmul.f32.gmra.mxu0 %v1465
        %v1484 = vpop.f32.mrf.mxu0
        %v1485 = vadd.f32 0.0, %v1484
        %1486 = vdwg.mxu0
        %v1488 = vsel %vm822, %v1485, 0
        %1490 = vmatpush.msra.mxu0 0.0
        %1491 = vmatpush.msra.mxu0 0.0
        %1492 = vmatpush.msra.mxu0 0.0
        %1493 = vmatpush.msra.mxu0 0.0
        %1494 = vmatpush.msra.mxu0 0.0
        %1495 = vmatpush.msra.mxu0 0.0
        %1496 = vmatpush.msra.mxu0 0.0
        %1497 = vmatpush.msra.mxu0 0.0
        %1498 = vmatpush.msra.mxu0 0.0
        %1499 = vmatpush.msra.mxu0 0.0
        %1500 = vmatpush.msra.mxu0 0.0
        %1501 = vmatpush.msra.mxu0 0.0
        %1502 = vmatpush.msra.mxu0 0.0
        %1503 = vmatpush.msra.mxu0 0.0
        %1504 = vmatpush.msra.mxu0 0.0
        %1505 = vmatpush.msra.mxu0 %v1355
        %1506 = vmatmul.f32.gmra.mxu0 %v1488
        %v1507 = vpop.f32.mrf.mxu0
        %v1508 = vadd.f32 0.0, %v1507
        %1509 = vdwg.mxu0
        %1510 = vrot.lane.b32.xlu0 %v1351, 112
        %v1511 = vpop.permute.xlu0 %1510
        %1512 = vrot.lane.b32.xlu0 %v1351, 80
        %v1513 = vpop.permute.xlu0 %1512
        %v1514 = vsel %vm822, %v1511, 0
        %v1516 = vsel %vm822, %v1513, 0
        %1518 = vmatpush.xpose.msra.mxu0 0.0
        %1519 = vmatpush.xpose.msra.mxu0 0.0
        %1520 = vmatpush.xpose.msra.mxu0 0.0
        %1521 = vmatpush.xpose.msra.mxu0 0.0
        %1522 = vmatpush.xpose.msra.mxu0 0.0
        %1523 = vmatpush.xpose.msra.mxu0 0.0
        %1524 = vmatpush.xpose.msra.mxu0 0.0
        %1525 = vmatpush.xpose.msra.mxu0 0.0
        %1526 = vmatpush.xpose.msra.mxu0 0.0
        %1527 = vmatpush.xpose.msra.mxu0 0.0
        %1528 = vmatpush.xpose.msra.mxu0 0.0
        %1529 = vmatpush.xpose.msra.mxu0 0.0
        %1530 = vmatpush.xpose.msra.mxu0 0.0
        %1531 = vmatpush.xpose.msra.mxu0 0.0
        %1532 = vmatpush.xpose.msra.mxu0 0.0
        %1533 = vmatpush.xpose.msra.mxu0 %v1516
        %1534 = vmatmul.f32.gmra.mxu0 %v1514
        %v1535 = vpop.f32.mrf.mxu0
        %v1536 = vadd.f32 %v817, %v1535
        %1537 = vdwg.mxu0
        %v1538 = vsel %vm822, %v1536, -inf
        %1539 = vmax.xlane.f32.xlu0 %v1538
        %v1540 = vpop.xlane.xlu0 %1539
        %v1541 = vsub.f32 %v1536, %v1540
        %v1542 = vmul.f32 %v1541, 1.442695
        %v1543 = vpow.pop %v1542
        %v1544 = vsel %vm822, %v1543, 0.0
        %1545 = vadd.xlane.f32.xlu0 %v1544
        %v1546 = vpop.xlane.xlu0 %1545
        %v1547 = vrcp.pop %v1546
        %v1548 = vmul.f32 %v1543, %v1547
        %1549 = vrot.lane.b32.xlu0 %v1351, 48
        %v1550 = vpop.permute.xlu0 %1549
        %v1553 = vsel %vm822, %v1548, 0
        %1555 = vmatpush.msra.mxu0 0.0
        %1556 = vmatpush.msra.mxu0 0.0
        %1557 = vmatpush.msra.mxu0 0.0
        %1558 = vmatpush.msra.mxu0 0.0
        %1559 = vmatpush.msra.mxu0 0.0
        %1560 = vmatpush.msra.mxu0 0.0
        %1561 = vmatpush.msra.mxu0 0.0
        %1562 = vmatpush.msra.mxu0 0.0
        %1563 = vmatpush.msra.mxu0 0.0
        %1564 = vmatpush.msra.mxu0 0.0
        %1565 = vmatpush.msra.mxu0 0.0
        %1566 = vmatpush.msra.mxu0 0.0
        %1567 = vmatpush.msra.mxu0 0.0
        %1568 = vmatpush.msra.mxu0 0.0
        %1569 = vmatpush.msra.mxu0 0.0
        %1570 = vmatpush.msra.mxu0 %v1550
        %1571 = vmatmul.f32.gmra.mxu0 %v1553
        %v1572 = vpop.f32.mrf.mxu0
        %v1573 = vadd.f32 0.0, %v1572
        %1574 = vdwg.mxu0
        %v1576 = vsel %vm822, %v1573, 0
        %1578 = vmatpush.msra.mxu0 0.0
        %1579 = vmatpush.msra.mxu0 0.0
        %1580 = vmatpush.msra.mxu0 0.0
        %1581 = vmatpush.msra.mxu0 0.0
        %1582 = vmatpush.msra.mxu0 0.0
        %1583 = vmatpush.msra.mxu0 0.0
        %1584 = vmatpush.msra.mxu0 0.0
        %1585 = vmatpush.msra.mxu0 0.0
        %1586 = vmatpush.msra.mxu0 0.0
        %1587 = vmatpush.msra.mxu0 0.0
        %1588 = vmatpush.msra.mxu0 0.0
        %1589 = vmatpush.msra.mxu0 0.0
        %1590 = vmatpush.msra.mxu0 0.0
        %1591 = vmatpush.msra.mxu0 0.0
        %1592 = vmatpush.msra.mxu0 0.0
        %1593 = vmatpush.msra.mxu0 %v1356
        %1594 = vmatmul.f32.gmra.mxu0 %v1576
        %v1595 = vpop.f32.mrf.mxu0
        %v1596 = vadd.f32 0.0, %v1595
        %1597 = vdwg.mxu0
        %1598 = vrot.lane.b32.xlu0 %v1351, 104
        %v1599 = vpop.permute.xlu0 %1598
        %1600 = vrot.lane.b32.xlu0 %v1351, 72
        %v1601 = vpop.permute.xlu0 %1600
        %v1602 = vsel %vm822, %v1599, 0
        %v1604 = vsel %vm822, %v1601, 0
        %1606 = vmatpush.xpose.msra.mxu0 0.0
        %1607 = vmatpush.xpose.msra.mxu0 0.0
        %1608 = vmatpush.xpose.msra.mxu0 0.0
        %1609 = vmatpush.xpose.msra.mxu0 0.0
        %1610 = vmatpush.xpose.msra.mxu0 0.0
        %1611 = vmatpush.xpose.msra.mxu0 0.0
        %1612 = vmatpush.xpose.msra.mxu0 0.0
        %1613 = vmatpush.xpose.msra.mxu0 0.0
        %1614 = vmatpush.xpose.msra.mxu0 0.0
        %1615 = vmatpush.xpose.msra.mxu0 0.0
        %1616 = vmatpush.xpose.msra.mxu0 0.0
        %1617 = vmatpush.xpose.msra.mxu0 0.0
        %1618 = vmatpush.xpose.msra.mxu0 0.0
        %1619 = vmatpush.xpose.msra.mxu0 0.0
        %1620 = vmatpush.xpose.msra.mxu0 0.0
        %1621 = vmatpush.xpose.msra.mxu0 %v1604
        %1622 = vmatmul.f32.gmra.mxu0 %v1602
        %v1623 = vpop.f32.mrf.mxu0
        %v1624 = vadd.f32 %v817, %v1623
        %1625 = vdwg.mxu0
        %v1626 = vsel %vm822, %v1624, -inf
        %1627 = vmax.xlane.f32.xlu0 %v1626
        %v1628 = vpop.xlane.xlu0 %1627
        %v1629 = vsub.f32 %v1624, %v1628
        %v1630 = vmul.f32 %v1629, 1.442695
        %v1631 = vpow.pop %v1630
        %v1632 = vsel %vm822, %v1631, 0.0
        %1633 = vadd.xlane.f32.xlu0 %v1632
        %v1634 = vpop.xlane.xlu0 %1633
        %v1635 = vrcp.pop %v1634
        %v1636 = vmul.f32 %v1631, %v1635
        %1637 = vrot.lane.b32.xlu0 %v1351, 40
        %v1638 = vpop.permute.xlu0 %1637
        %v1641 = vsel %vm822, %v1636, 0
        %1643 = vmatpush.msra.mxu0 0.0
        %1644 = vmatpush.msra.mxu0 0.0
        %1645 = vmatpush.msra.mxu0 0.0
        %1646 = vmatpush.msra.mxu0 0.0
        %1647 = vmatpush.msra.mxu0 0.0
        %1648 = vmatpush.msra.mxu0 0.0
        %1649 = vmatpush.msra.mxu0 0.0
        %1650 = vmatpush.msra.mxu0 0.0
        %1651 = vmatpush.msra.mxu0 0.0
        %1652 = vmatpush.msra.mxu0 0.0
        %1653 = vmatpush.msra.mxu0 0.0
        %1654 = vmatpush.msra.mxu0 0.0
        %1655 = vmatpush.msra.mxu0 0.0
        %1656 = vmatpush.msra.mxu0 0.0
        %1657 = vmatpush.msra.mxu0 0.0
        %1658 = vmatpush.msra.mxu0 %v1638
        %1659 = vmatmul.f32.gmra.mxu0 %v1641
        %v1660 = vpop.f32.mrf.mxu0
        %v1661 = vadd.f32 0.0, %v1660
        %1662 = vdwg.mxu0
        %v1664 = vsel %vm822, %v1661, 0
        %1666 = vmatpush.msra.mxu0 0.0
        %1667 = vmatpush.msra.mxu0 0.0
        %1668 = vmatpush.msra.mxu0 0.0
        %1669 = vmatpush.msra.mxu0 0.0
        %1670 = vmatpush.msra.mxu0 0.0
        %1671 = vmatpush.msra.mxu0 0.0
        %1672 = vmatpush.msra.mxu0 0.0
        %1673 = vmatpush.msra.mxu0 0.0
        %1674 = vmatpush.msra.mxu0 0.0
        %1675 = vmatpush.msra.mxu0 0.0
        %1676 = vmatpush.msra.mxu0 0.0
        %1677 = vmatpush.msra.mxu0 0.0
        %1678 = vmatpush.msra.mxu0 0.0
        %1679 = vmatpush.msra.mxu0 0.0
        %1680 = vmatpush.msra.mxu0 0.0
        %1681 = vmatpush.msra.mxu0 %v1357
        %1682 = vmatmul.f32.gmra.mxu0 %v1664
        %v1683 = vpop.f32.mrf.mxu0
        %v1684 = vadd.f32 0.0, %v1683
        %1685 = vdwg.mxu0
        %v1687 = vsel %vm822, %v1420, 0
        %1689 = vmatpush.msra.mxu0 0.0
        %1690 = vmatpush.msra.mxu0 0.0
        %1691 = vmatpush.msra.mxu0 0.0
        %1692 = vmatpush.msra.mxu0 0.0
        %1693 = vmatpush.msra.mxu0 0.0
        %1694 = vmatpush.msra.mxu0 0.0
        %1695 = vmatpush.msra.mxu0 0.0
        %1696 = vmatpush.msra.mxu0 0.0
        %1697 = vmatpush.msra.mxu0 0.0
        %1698 = vmatpush.msra.mxu0 0.0
        %1699 = vmatpush.msra.mxu0 0.0
        %1700 = vmatpush.msra.mxu0 0.0
        %1701 = vmatpush.msra.mxu0 0.0
        %1702 = vmatpush.msra.mxu0 0.0
        %1703 = vmatpush.msra.mxu0 0.0
        %1704 = vmatpush.msra.mxu0 %v1354
        %1705 = vmatmul.f32.gmra.mxu0 %v1687
        %v1706 = vpop.f32.mrf.mxu0
        %v1707 = vadd.f32 %v1508, %v1706
        %1708 = vdwg.mxu0
        %v1709 = vadd.f32 %v1707, %v1596
        %v1710 = vadd.f32 %v1709, %v1684
        %s1711 = scalar_lea.vmem %s7, 1
        %v1712 = vld [vmem:[%s1711] sm:$0x1]
        %v1714 = vperm.slane %v1712, 0
        %v1716 = vadd.f32 %v1710, %v1714
        %v1717 = vadd.f32 %v1716, %v1319
        %s1718 = scalar_lea.vmem [#allocation8], 1
        %v1719 = vld [vmem:[%s1718] sm:$0x1]
        %s1720 = scalar_lea.vmem %s9, 1
        %v1721 = vld [vmem:[%s1720] sm:$0x1]
        %v1722 = vsel %vm743, %v1717, 0.0
        %1723 = vadd.xlane.f32.xlu0 %v1722
        %v1724 = vpop.xlane.xlu0 %1723
        %v1725 = vmul.f32 %v1724, %v753
        %v1726 = vsub.f32 %v1717, %v1725
        %v1727 = vmul.f32 %v1726, %v1726
        %v1728 = vsel %vm743, %v1727, 0.0
        %1729 = vadd.xlane.f32.xlu0 %v1728
        %v1730 = vpop.xlane.xlu0 %1729
        %v1731 = vmul.f32 %v1730, %v753
        %v1732 = vadd.f32 %v1731, 1e-12
        %v1733 = vrsqrt.pop %v1732
        %v1734 = vmul.f32 %v1733, %v1732
        %v1735 = vmul.f32 %v1734, %v1733
        %v1736 = vmul.f32 0.5, %v1735
        %v1737 = vsub.f32 1.5, %v1736
        %v1738 = vmul.f32 %v1733, %v1737
        %vm1739 = vweird.f32 %v1732
        %vm1740 = vweird.f32 %v1733
        %vm1741 = vmor %vm1739, %vm1740
        %v1742 = vsel %vm1741, %v1733, %v1738
        %v1743 = vmul.f32 %v1726, %v1742
        %v1745 = vperm.slane %v1719, 0
        %v1747 = vmul.f32 %v1743, %v1745
        %v1749 = vperm.slane %v1721, 0
        %v1751 = vadd.f32 %v1747, %v1749
        %s1752 = scalar_lea.vmem %s10, 32
        %v1753 = vld [vmem:[%s1752] sm:$0xff]
        %v1754 = vld [vmem:[%s1752 + $0x8] sm:$0xff]
        %v1755 = vld [vmem:[%s1752 + $0x10] sm:$0xff]
        %v1756 = vld [vmem:[%s1752 + $0x18] sm:$0xff]
        %s1757 = scalar_lea.vmem [#allocation10], 1
        %v1758 = vld [vmem:[%s1757] sm:$0x1]
        %v1760 = vperm.slane %v1758, 0
        %v1763 = vsel %vm743, %v1751, 0
        %1765 = vmatpush.msra.mxu0 0.0
        %1766 = vmatpush.msra.mxu0 0.0
        %1767 = vmatpush.msra.mxu0 0.0
        %1768 = vmatpush.msra.mxu0 0.0
        %1769 = vmatpush.msra.mxu0 0.0
        %1770 = vmatpush.msra.mxu0 0.0
        %1771 = vmatpush.msra.mxu0 0.0
        %1772 = vmatpush.msra.mxu0 0.0
        %1773 = vmatpush.msra.mxu0 0.0
        %1774 = vmatpush.msra.mxu0 0.0
        %1775 = vmatpush.msra.mxu0 0.0
        %1776 = vmatpush.msra.mxu0 0.0
        %1777 = vmatpush.msra.mxu0 %v1756
        %1778 = vmatpush.msra.mxu0 %v1755
        %1779 = vmatpush.msra.mxu0 %v1754
        %1780 = vmatpush.msra.mxu0 %v1753
        %1781 = vmatmul.f32.gmra.mxu0 %v1763
        %v1782 = vpop.f32.mrf.mxu0
        %v1783 = vadd.f32 %v1760, %v1782
        %1784 = vdwg.mxu0
        %v1785 = vmul.f32 %v1783, %v1783
        %v1786 = vmul.f32 %v1783, %v1785
        %v1787 = vmul.f32 %v1786, 0.044715
        %v1788 = vadd.f32 %v1783, %v1787
        %v1789 = vmul.f32 %v1788, 0.7978846
        %v1790 = vtanh.pop %v1789
        %v1791 = vadd.f32 %v1790, 1.0
        %v1792 = vmul.f32 %v1791, 0.5
        %v1793 = vmul.f32 %v1783, %v1792
        %s1794 = scalar_lea.vmem %s12, 64
        %v1795 = vld [vmem:[%s1794] sm:$0xff]
        %v1796 = vld [vmem:[%s1794 + $0x8] sm:$0xff]
        %v1797 = vld [vmem:[%s1794 + $0x10] sm:$0xff]
        %v1798 = vld [vmem:[%s1794 + $0x18] sm:$0xff]
        %v1799 = vld [vmem:[%s1794 + $0x20] sm:$0xff]
        %v1800 = vld [vmem:[%s1794 + $0x28] sm:$0xff]
        %v1801 = vld [vmem:[%s1794 + $0x30] sm:$0xff]
        %v1802 = vld [vmem:[%s1794 + $0x38] sm:$0xff]
        %s1803 = scalar_lea.vmem %s13, 1
        %v1804 = vld [vmem:[%s1803] sm:$0x1]
        %v1806 = vperm.slane %v1804, 0
        %v1809 = vsel %vm1263, %v1793, 0
        %1811 = vmatpush.msra.mxu0 0.0
        %1812 = vmatpush.msra.mxu0 0.0
        %1813 = vmatpush.msra.mxu0 0.0
        %1814 = vmatpush.msra.mxu0 0.0
        %1815 = vmatpush.msra.mxu0 0.0
        %1816 = vmatpush.msra.mxu0 0.0
        %1817 = vmatpush.msra.mxu0 0.0
        %1818 = vmatpush.msra.mxu0 0.0
        %1819 = vmatpush.msra.mxu0 %v1802
        %1820 = vmatpush.msra.mxu0 %v1801
        %1821 = vmatpush.msra.mxu0 %v1800
        %1822 = vmatpush.msra.mxu0 %v1799
        %1823 = vmatpush.msra.mxu0 %v1798
        %1824 = vmatpush.msra.mxu0 %v1797
        %1825 = vmatpush.msra.mxu0 %v1796
        %1826 = vmatpush.msra.mxu0 %v1795
        %1827 = vmatmul.f32.gmra.mxu0 %v1809
        %v1828 = vpop.f32.mrf.mxu0
        %v1829 = vadd.f32 %v1806, %v1828
        %1830 = vdwg.mxu0
        %v1831 = vadd.f32 %v1829, %v1751
        %s1832 = scalar_lea.vmem [#allocation11], 1
        %v1833 = vld [vmem:[%s1832] sm:$0x1]
        %s1834 = scalar_lea.vmem %s15, 1
        %v1835 = vld [vmem:[%s1834] sm:$0x1]
        %v1836 = vsel %vm743, %v1831, 0.0
        %1837 = vadd.xlane.f32.xlu0 %v1836
        %v1838 = vpop.xlane.xlu0 %1837
        %v1839 = vmul.f32 %v1838, %v753
        %v1840 = vsub.f32 %v1831, %v1839
        %v1841 = vmul.f32 %v1840, %v1840
        %v1842 = vsel %vm743, %v1841, 0.0
        %1843 = vadd.xlane.f32.xlu0 %v1842
        %v1844 = vpop.xlane.xlu0 %1843
        %v1845 = vmul.f32 %v1844, %v753
        %v1846 = vadd.f32 %v1845, 1e-12
        %v1847 = vrsqrt.pop %v1846
        %v1848 = vmul.f32 %v1847, %v1846
        %v1849 = vmul.f32 %v1848, %v1847
        %v1850 = vmul.f32 0.5, %v1849
        %v1851 = vsub.f32 1.5, %v1850
        %v1852 = vmul.f32 %v1847, %v1851
        %vm1853 = vweird.f32 %v1846
        %vm1854 = vweird.f32 %v1847
        %vm1855 = vmor %vm1853, %vm1854
        %v1856 = vsel %vm1855, %v1847, %v1852
        %v1857 = vmul.f32 %v1840, %v1856
        %v1859 = vperm.slane %v1833, 0
        %v1861 = vmul.f32 %v1857, %v1859
        %v1863 = vperm.slane %v1835, 0
        %v1865 = vadd.f32 %v1861, %v1863
        %v1866 = vld [vmem:[%s16] sm:$0xff]
        %v1867 = vld [vmem:[%s16 + $0x8] sm:$0xff]
        %v1868 = vld [vmem:[%s16 + $0x10] sm:$0xff]
        %v1869 = vld [vmem:[%s16 + $0x18] sm:$0xff]
        %v1870 = vld [vmem:[%s17] sm:$0x1]
        %v1872 = vsel %vm743, %v1865, 0
        %1874 = vmatpush.msra.mxu0 0.0
        %1875 = vmatpush.msra.mxu0 0.0
        %1876 = vmatpush.msra.mxu0 0.0
        %1877 = vmatpush.msra.mxu0 0.0
        %1878 = vmatpush.msra.mxu0 0.0
        %1879 = vmatpush.msra.mxu0 0.0
        %1880 = vmatpush.msra.mxu0 0.0
        %1881 = vmatpush.msra.mxu0 0.0
        %1882 = vmatpush.msra.mxu0 0.0
        %1883 = vmatpush.msra.mxu0 0.0
        %1884 = vmatpush.msra.mxu0 0.0
        %1885 = vmatpush.msra.mxu0 0.0
        %1886 = vmatpush.msra.mxu0 %v1869
        %1887 = vmatpush.msra.mxu0 %v1868
        %1888 = vmatpush.msra.mxu0 %v1867
        %1889 = vmatpush.msra.mxu0 %v1866
        %1890 = vmatmul.f32.gmra.mxu0 %v1872
        %v1891 = vpop.f32.mrf.mxu0
        %v1892 = vadd.f32 %v1870, %v1891
        %1893 = vdwg.mxu0
        %v1894 = vtanh.pop %v1892
        %v1895 = vld [vmem:[%s18] sm:$0xff]
        %v1896 = vld [vmem:[%s18 + $0x8] sm:$0xff]
        %v1897 = vld [vmem:[%s18 + $0x10] sm:$0xff]
        %v1898 = vld [vmem:[%s18 + $0x18] sm:$0xff]
        %v1899 = vld [vmem:[%s19] sm:$0x1]
        %v1901 = vsel %vm743, %v1894, 0
        %1903 = vmatpush.msra.mxu0 0.0
        %1904 = vmatpush.msra.mxu0 0.0
        %1905 = vmatpush.msra.mxu0 0.0
        %1906 = vmatpush.msra.mxu0 0.0
        %1907 = vmatpush.msra.mxu0 0.0
        %1908 = vmatpush.msra.mxu0 0.0
        %1909 = vmatpush.msra.mxu0 0.0
        %1910 = vmatpush.msra.mxu0 0.0
        %1911 = vmatpush.msra.mxu0 0.0
        %1912 = vmatpush.msra.mxu0 0.0
        %1913 = vmatpush.msra.mxu0 0.0
        %1914 = vmatpush.msra.mxu0 0.0
        %1915 = vmatpush.msra.mxu0 %v1898
        %1916 = vmatpush.msra.mxu0 %v1897
        %1917 = vmatpush.msra.mxu0 %v1896
        %1918 = vmatpush.msra.mxu0 %v1895
        %1919 = vmatmul.f32.gmra.mxu0 %v1901
        %v1920 = vpop.f32.mrf.mxu0
        %v1921 = vadd.f32 %v1899, %v1920
        %1922 = vdwg.mxu0
        %vm1923 = vcmask 16384
        %v1924 = vsel %vm1923, %v1921, -inf
        %1925 = vmax.xlane.f32.xlu0 %v1924
        %v1926 = vpop.xlane.xlu0 %1925
        %v1927 = vsub.f32 %v1921, %v1926
        %v1928 = vmul.f32 %v1927, 1.442695
        %v1929 = vpow.pop %v1928
        %v1930 = vsel %vm1923, %v1929, 0.0
        %1931 = vadd.xlane.f32.xlu0 %v1930
        %v1932 = vpop.xlane.xlu0 %1931
        %v1933 = vrcp.pop %v1932
        %v1934 = vmul.f32 %v1932, %v1933
        %v1935 = vsub.f32 1.0, %v1934
        %v1936 = vmul.f32 %v1933, %v1935
        %v1937 = vadd.f32 %v1933, %v1936
        %vm1938 = vweird.f32 %v1932
        %vm1939 = vweird.f32 %v1933
        %vm1940 = vmor %vm1938, %vm1939
        %v1941 = vsel %vm1940, %v1933, %v1937
        %v1942 = vand.u32 2147483647, %v1932
        %vm1943 = vcmp.eq.f32.partialorder %v1942, 8.507059e+37
        %v1944 = vand.u32 %v1932, 2147483648
        %v1945 = vor.u32 1.1754944e-38, %v1944
        %v1946 = vsel %vm1943, %v1945, %v1941
        %v1947 = vmul.f32 %v1929, %v1946
        %1948 = vst.msk [vmem:[%s735] sm:$0x1] %vm1923, %v1947
        %s1949 = sand.u32 %s478, 1
        %s1950 = scalar_lea.sflag [#allocation4], %s1949
        %s1951 = sand.u32 %s478, 1
        %s1952 = scalar_lea.vmem [#allocation13], %s1951
        // Predicated region
        $region125: #{tpu_custom_call.1} parent=99 // pred_check
          %p1953 = pneg %p488
        $region126: #{tpu_custom_call.1} parent=99 // pred_check_branch
          %1955 = sbr.rel (%p1953) target = $region128
        $region127: #{tpu_custom_call.1} parent=99 // pred_region
          %1957 = vsyncadd %s1950, 0
          %s1958 = scalar_lea.hbm %s20, %s40
          %s1960 = sshll.u32 %s1952, 4
          %s1961 = int_to_ptr.vmem [resolvable:$true] %s1960
          %s1962 = sshll.u32 %s1958, 4
          %s1963 = int_to_ptr.hbm [resolvable:$true] %s1962
          %1965 = dma.vmem_to_hbm [thread:$0]  %s1961, 16, %s1963, %s1950
        $region128: #{tpu_custom_call.1} parent=99 // pred_fallthru
          _
      $region100: #{tpu_custom_call.1} parent=5 // pred_fallthru
        _
      %p1966 = scmp.le.s32.totalorder 2, %s35
      // Predicated region
      $region129: #{tpu_custom_call.1} parent=5 // pred_check
        %p1967 = pneg %p1966
      $region130: #{tpu_custom_call.1} parent=5 // pred_check_branch
        %1969 = sbr.rel (%p1967) target = $region132
      $region131: #{tpu_custom_call.1} parent=5 // pred_region
        %s1970 = ssub.s32 %s35, 2
        // Predicated region
        $region133: #{tpu_custom_call.1} parent=131 // pred_check
          %p1971 = pneg %p494
        $region134: #{tpu_custom_call.1} parent=131 // pred_check_branch
          %1973 = sbr.rel (%p1971) target = $region136
        $region135: #{tpu_custom_call.1} parent=131 // pred_region
          %s1974 = sand.u32 %s479, 1
          %s1975 = scalar_lea.sflag [#allocation4], %s1974
          %s1976 = sand.u32 %s479, 1
          %s1977 = scalar_lea.vmem [#allocation13], %s1976
          %1979 = dma.done %s1975, 16
        $region136: #{tpu_custom_call.1} parent=131 // pred_fallthru
          _
      $region132: #{tpu_custom_call.1} parent=5 // pred_fallthru
        _
    $region6: #{tpu_custom_call.1} parent=1 // loop_footer
      %s39 = sadd.s32 1, %s35
    $region7: #{tpu_custom_call.1} parent=1 // loop_footer_branch
      %34 = sbr.rel target = $region3
    $region8: #{tpu_custom_call.1} parent=1 // loop_exit
      _
    %1980 = vsyncpa [#allocation3], 1
    %s1981 = scalar_lea.sflag [#allocation3], 1
    %1982 = vsyncpa %s1981, 1
    %1983 = vsyncpa [#allocation6], 1
    %1984 = vsyncpa [#allocation9], 1
    %1985 = vsyncpa [#allocation12], 1
    %1986 = vsyncpa [#allocation4], 1
    %s1987 = scalar_lea.sflag [#allocation4], 1
    %1988 = vsyncpa %s1987, 1

</llo_original>
